<compile_context>
chip_gen: v5e
topology: v5e:2x2
jax: 0.10.0
libtpu: 0.0.40
codegen_flags: <defaults>
</compile_context>

<pallas_src>
import functools

import jax
import jax.numpy as jnp
from jax import lax
from jax.experimental import pallas as pl
from jax.experimental.pallas import tpu as pltpu

EMBED = 128
HIDDEN = 128

# MXU operand dtype: bf16 is native on v5e/v6e/v7x (~2x f32 throughput, half the
# weight/table DMA bytes).  Accumulation stays f32; gate nonlinearities stay f32
# (v5e has no bf16 VPU/EUP).
_MM_DTYPE = jnp.bfloat16


def _lstm_disc_kernel(maxlen_ref, tok_ref, len_ref, emb_ref, wih_ref, whh_ref,
                      b_ref, wout_ref, bout_ref, o_ref,
                      gx_scr, h_scr, c_scr, *, TC, B):
    H = HIDDEN
    Vp = emb_ref.shape[0]
    chunk = pl.program_id(0)
    chunk_start = chunk * TC
    max_len = maxlen_ref[0]

    @pl.when(chunk == 0)
    def _init():
        h_scr[...] = jnp.zeros_like(h_scr)
        c_scr[...] = jnp.zeros_like(c_scr)

    # Skip whole time-chunks that lie entirely past max(lengths): every row is
    # masked there, so they cannot change h/c.
    @pl.when(chunk_start < max_len)
    def _chunk():
        # ---- Phase 1 (parallel): embedding gather + input projection for the
        # whole chunk.  One-hot @ table is an exact MXU row-gather.
        tok = tok_ref[...]                                          # [TC*B, 1] i32
        onehot = (lax.broadcasted_iota(jnp.int32, (1, Vp), 1) == tok
                  ).astype(_MM_DTYPE)                               # [TC*B, Vp] bf16
        x_emb = jnp.dot(onehot, emb_ref[...],
                        preferred_element_type=jnp.float32)         # [TC*B, E] f32
        gx_scr[...] = jnp.dot(x_emb.astype(_MM_DTYPE), wih_ref[...],
                              preferred_element_type=jnp.float32) + b_ref[...]

        # ---- Phase 2 (serial): recurrence with register-carried (h, c); only
        # h @ W_hh^T remains on the per-step critical path.
        whh = whh_ref[...]                     # bf16 [H, 4H], loaded once
        lens = len_ref[...]                    # [B, 1] i32, loaded once

        def step(lt, carry):
            h, c = carry
            start = pl.multiple_of(lt * B, 8)  # B is padded to a multiple of 8
            gates = gx_scr[pl.ds(start, B), :] + jnp.dot(
                h.astype(_MM_DTYPE), whh, preferred_element_type=jnp.float32)
            i = jax.nn.sigmoid(gates[:, 0 * H:1 * H])
            f = jax.nn.sigmoid(gates[:, 1 * H:2 * H])
            g = jnp.tanh(gates[:, 2 * H:3 * H])
            o = jax.nn.sigmoid(gates[:, 3 * H:4 * H])
            c_new = f * c + i * g
            h_new = o * jnp.tanh(c_new)
            m = lens > (chunk_start + lt)      # step valid iff global t < len
            return jnp.where(m, h_new, h), jnp.where(m, c_new, c)

        # Partial unroll keeps LLO scheduling visibility without blowing up
        # vreg live ranges / instruction memory for long chunks.
        h, c = lax.fori_loop(0, TC, step, (h_scr[...], c_scr[...]),
                             unroll=min(8, TC))
        h_scr[...] = h
        c_scr[...] = c

    # ---- Output head, last grid step only.  pad_packed_sequence pads with
    # zeros, so rows with len < max(len) see a zero hidden state at x[:, -1].
    @pl.when(chunk == pl.num_programs(0) - 1)
    def _head():
        last = len_ref[...] == max_len                              # [B, 1] bool
        h_last = jnp.where(last, h_scr[...], 0.0)                   # [B, H]
        h_act = jnp.where(h_last >= 0, h_last, 0.2 * h_last)        # leaky_relu(0.2)
        logit = jnp.sum(h_act * wout_ref[...], axis=-1, keepdims=True) + bout_ref[...]
        o_ref[...] = jax.nn.sigmoid(logit)                          # [B, 1]


def _vmem_padded_bytes(shape, dtype):
    shape = (1,) * max(0, 2 - len(shape)) + tuple(shape)
    padded = list(shape)
    padded[-1] = -(-padded[-1] // 128) * 128
    padded[-2] = -(-padded[-2] // 8) * 8
    n = jnp.dtype(dtype).itemsize
    for d in padded:
        n *= d
    return n


def _vmem_capacity_bytes():
    try:
        return int(pltpu.get_tpu_info().vmem_capacity_bytes)
    except Exception:
        return 64 * 2 ** 20        # conservative default (v7x per-core size)


def discriminator_forward(tokens, lengths, params, *, time_chunk=None):
    """tokens: int32 [B, T]; lengths: int32 [B]; returns float32 [B]."""
    B, T = tokens.shape
    V, E = params["embedding"].shape
    H = HIDDEN

    # Pad batch to a sublane multiple (padded rows get length 0 -> inert) and
    # vocab to a lane multiple so all in-kernel matmuls are aligned.
    Bp = max(8, -(-B // 8) * 8)
    Vp = max(128, -(-V // 128) * 128)

    # Chunk the time axis through the grid so gx / one-hot residency stays
    # bounded (and token DMA is pipelined) instead of scaling with T.
    if time_chunk is None:
        time_chunk = max(1, min(T, 1024 // Bp))
    TC = max(1, min(int(time_chunk), T))
    Tpad = -(-T // TC) * TC
    n_chunks = Tpad // TC

    tok_tm = jnp.transpose(tokens.astype(jnp.int32))                # [T, B]
    tok_tm = jnp.pad(tok_tm, ((0, Tpad - T), (0, Bp - B)))          # [Tpad, Bp]
    tok_flat = tok_tm.reshape(Tpad * Bp, 1)                         # time-major rows

    lens_p = jnp.pad(lengths.astype(jnp.int32), (0, Bp - B))
    lens_in = lens_p.reshape(Bp, 1)
    max_len = jnp.max(lengths).astype(jnp.int32).reshape(1)         # scalar prefetch

    emb = jnp.pad(params["embedding"], ((0, Vp - V), (0, 0))).astype(_MM_DTYPE)
    w_ih_t = jnp.transpose(params["w_ih"]).astype(_MM_DTYPE)        # [E, 4H]
    w_hh_t = jnp.transpose(params["w_hh"]).astype(_MM_DTYPE)        # [H, 4H]
    b = (params["b_ih"] + params["b_hh"]).reshape(1, 4 * H).astype(jnp.float32)
    w_out = params["w_out"].reshape(1, H).astype(jnp.float32)
    b_out = params["b_out"].reshape(1, 1).astype(jnp.float32)

    vmem = pl.BlockSpec(memory_space=pltpu.MemorySpace.VMEM)        # whole-array VMEM
    grid_spec = pltpu.PrefetchScalarGridSpec(
        num_scalar_prefetch=1,
        grid=(n_chunks,),
        in_specs=[
            pl.BlockSpec((TC * Bp, 1), lambda c, ml: (c, 0)),       # tokens (chunked)
            vmem,   # lengths
            vmem,   # embedding table (bf16)
            vmem,   # W_ih^T (bf16)
            vmem,   # W_hh^T (bf16)
            vmem,   # gate bias
            vmem,   # W_out
            vmem,   # b_out
        ],
        out_specs=pl.BlockSpec((Bp, 1), lambda c, ml: (0, 0)),
        scratch_shapes=[
            pltpu.VMEM((TC * Bp, 4 * H), jnp.float32),   # chunk x @ W_ih + b
            pltpu.VMEM((Bp, H), jnp.float32),            # h (persists across chunks)
            pltpu.VMEM((Bp, H), jnp.float32),            # c (persists across chunks)
        ],
    )

    # VMEM budget: residents + the main in-kernel temporaries, with headroom
    # against the physical per-core capacity (64 MiB on v7x, 128 on v5e/v6e).
    est = (
        2 * _vmem_padded_bytes((TC * Bp, 1), jnp.int32)             # token chunk x2 buf
        + _vmem_padded_bytes((Bp, 1), jnp.int32)                    # lengths
        + _vmem_padded_bytes((Vp, E), _MM_DTYPE)                    # embedding
        + _vmem_padded_bytes((E, 4 * H), _MM_DTYPE)                 # W_ih^T
        + _vmem_padded_bytes((H, 4 * H), _MM_DTYPE)                 # W_hh^T
        + _vmem_padded_bytes((1, 4 * H), jnp.float32)
        + _vmem_padded_bytes((1, H), jnp.float32)
        + _vmem_padded_bytes((1, 1), jnp.float32)
        + 2 * _vmem_padded_bytes((Bp, 1), jnp.float32)              # output
        + _vmem_padded_bytes((TC * Bp, 4 * H), jnp.float32)         # gx scratch
        + 2 * _vmem_padded_bytes((Bp, H), jnp.float32)              # h, c scratch
        + _vmem_padded_bytes((TC * Bp, Vp), _MM_DTYPE)              # one-hot temp
        + _vmem_padded_bytes((TC * Bp, E), jnp.float32)             # x_emb temp
    )
    cap = _vmem_capacity_bytes()
    vmem_limit = max(int(1.5 * est), 32 * 2 ** 20)
    vmem_limit = min(vmem_limit, int(0.85 * cap))

    out = pl.pallas_call(
        functools.partial(_lstm_disc_kernel, TC=TC, B=Bp),
        out_shape=jax.ShapeDtypeStruct((Bp, 1), jnp.float32),
        grid_spec=grid_spec,
        compiler_params=pltpu.CompilerParams(
            dimension_semantics=("arbitrary",),      # h/c carried across chunks
            vmem_limit_bytes=vmem_limit,
        ),
    )(max_len, tok_flat, lens_in, emb, w_ih_t, w_hh_t, b, w_out, b_out)
    # TODO(synk): hold W_hh stationary in the MXU (pltpu.matmul_push_rhs /
    # matmul_acc_lhs / matmul_pop) so the [H, 4H] RHS is not re-streamed every
    # recurrence step; the staging-tile split differs per generation.
    # TODO(synk): for large B on v7x, add a leading "parallel" grid axis (or a
    # core_map over a 2-core TensorCore mesh) over batch tiles to use both TCs.
    return out[:B, 0]                                               # x[:, -1].squeeze()


def reference_forward(tokens, lengths, params):
    """Pure-JAX f32 reference mirroring the PyTorch module."""
    emb = params["embedding"][tokens].astype(jnp.float32)           # [B, T, E]
    B, T, _ = emb.shape
    H = HIDDEN
    w_ih, w_hh = params["w_ih"], params["w_hh"]
    b = params["b_ih"] + params["b_hh"]

    def cell(carry, inp):
        h, c = carry
        x_t, m_t = inp
        gates = x_t @ w_ih.T + h @ w_hh.T + b
        i = jax.nn.sigmoid(gates[:, :H])
        f = jax.nn.sigmoid(gates[:, H:2 * H])
        g = jnp.tanh(gates[:, 2 * H:3 * H])
        o = jax.nn.sigmoid(gates[:, 3 * H:])
        c_new = f * c + i * g
        h_new = o * jnp.tanh(c_new)
        c = m_t * c_new + (1.0 - m_t) * c
        h = m_t * h_new + (1.0 - m_t) * h
        return (h, c), h

    x_tm = jnp.transpose(emb, (1, 0, 2))
    step_mask = (jnp.arange(T)[:, None] < lengths[None, :]).astype(jnp.float32)[:, :, None]
    (h, _), _ = lax.scan(cell, (jnp.zeros((B, H)), jnp.zeros((B, H))), (x_tm, step_mask))
    last_mask = (lengths == jnp.max(lengths)).astype(jnp.float32)[:, None]
    h_last = h * last_mask
    h_act = jnp.where(h_last >= 0, h_last, 0.2 * h_last)
    logit = h_act @ params["w_out"].T + params["b_out"]
    return jax.nn.sigmoid(logit)[:, 0]


if __name__ == "__main__":
    key = jax.random.PRNGKey(0)
    vocab_size = 50
    ks = jax.random.split(key, 9)
    params = {
        "embedding": 0.10 * jax.random.normal(ks[0], (vocab_size, EMBED), jnp.float32),
        "w_ih":      0.05 * jax.random.normal(ks[1], (4 * HIDDEN, EMBED), jnp.float32),
        "w_hh":      0.05 * jax.random.normal(ks[2], (4 * HIDDEN, HIDDEN), jnp.float32),
        "b_ih":      0.05 * jax.random.normal(ks[3], (4 * HIDDEN,), jnp.float32),
        "b_hh":      0.05 * jax.random.normal(ks[4], (4 * HIDDEN,), jnp.float32),
        "w_out":     0.10 * jax.random.normal(ks[5], (1, HIDDEN), jnp.float32),
        "b_out":     0.10 * jax.random.normal(ks[6], (1,), jnp.float32),
    }

    # Case 1: single time-chunk (B=2, T=8, ragged lengths).
    B1, T1 = 2, 8
    tok1 = jax.random.randint(ks[7], (B1, T1), 0, vocab_size, dtype=jnp.int32)
    len1 = jnp.array([T1, 5], dtype=jnp.int32)
    out1 = jax.block_until_ready(discriminator_forward(tok1, len1, params))
    ref1 = reference_forward(tok1, len1, params)
    assert out1.shape == (B1,), out1.shape
    assert jnp.allclose(out1, ref1, atol=3e-2, rtol=3e-2), (out1, ref1)

    # Case 2: multi-chunk grid (3 chunks of 8 steps), ragged lengths, and a
    # trailing chunk that lies entirely past max(lengths) (skipped in-kernel).
    B2, T2 = 4, 20
    tok2 = jax.random.randint(ks[8], (B2, T2), 0, vocab_size, dtype=jnp.int32)
    len2 = jnp.array([14, 9, 14, 3], dtype=jnp.int32)
    out2 = jax.block_until_ready(
        discriminator_forward(tok2, len2, params, time_chunk=8))
    ref2 = reference_forward(tok2, len2, params)
    assert out2.shape == (B2,), out2.shape
    assert jnp.allclose(out2, ref2, atol=3e-2, rtol=3e-2), (out2, ref2)

    print("KERNEL_OK")
</pallas_src>

<mosaic_0001>
module attributes {stable_mosaic.version = 11 : i64} {
  func.func @_lstm_disc_kernel(%arg0: i32, %arg1: memref<1xi32, #tpu.memory_space<smem>>, %arg2: memref<64x1xi32, #tpu.memory_space<vmem>>, %arg3: memref<8x1xi32, #tpu.memory_space<vmem>>, %arg4: memref<128x128xbf16, #tpu.memory_space<vmem>>, %arg5: memref<128x512xbf16, #tpu.memory_space<vmem>>, %arg6: memref<128x512xbf16, #tpu.memory_space<vmem>>, %arg7: memref<1x512xf32, #tpu.memory_space<vmem>>, %arg8: memref<1x128xf32, #tpu.memory_space<vmem>>, %arg9: memref<1x1xf32, #tpu.memory_space<vmem>>, %arg10: memref<8x1xf32, #tpu.memory_space<vmem>>, %arg11: memref<64x512xf32, #tpu.memory_space<vmem>>, %arg12: memref<8x128xf32, #tpu.memory_space<vmem>>, %arg13: memref<8x128xf32, #tpu.memory_space<vmem>>) attributes {dimension_semantics = [#tpu.dimension_semantics<arbitrary>], iteration_bounds = array<i64: 1>, scalar_prefetch = 1 : i64, scratch_operands = 3 : i64, tpu.core_type = #tpu.core_type<tc>, window_params = [{transform_indices = @transform_0, window_bounds = array<i64: 64, 1>}, {pipeline_mode = #tpu.pipeline_mode<synchronous>, transform_indices = @transform_1, window_bounds = array<i64: 8, 1>}, {pipeline_mode = #tpu.pipeline_mode<synchronous>, transform_indices = @transform_2, window_bounds = array<i64: 128, 128>}, {pipeline_mode = #tpu.pipeline_mode<synchronous>, transform_indices = @transform_3, window_bounds = array<i64: 128, 512>}, {pipeline_mode = #tpu.pipeline_mode<synchronous>, transform_indices = @transform_4, window_bounds = array<i64: 128, 512>}, {pipeline_mode = #tpu.pipeline_mode<synchronous>, transform_indices = @transform_5, window_bounds = array<i64: 1, 512>}, {pipeline_mode = #tpu.pipeline_mode<synchronous>, transform_indices = @transform_6, window_bounds = array<i64: 1, 128>}, {pipeline_mode = #tpu.pipeline_mode<synchronous>, transform_indices = @transform_7, window_bounds = array<i64: 1, 1>}, {pipeline_mode = #tpu.pipeline_mode<synchronous>, transform_indices = @transform_8, window_bounds = array<i64: 8, 1>}]} {
    %c8_i32 = arith.constant 8 : i32
    %0 = arith.muli %arg0, %c8_i32 : i32
    %c0 = arith.constant 0 : index
    %1 = memref.load %arg1[%c0] : memref<1xi32, #tpu.memory_space<smem>>
    %c0_i32 = arith.constant 0 : i32
    %2 = arith.cmpi eq, %arg0, %c0_i32 : i32
    %3 = arith.extui %2 : i1 to i32
    %c0_i32_0 = arith.constant 0 : i32
    %4 = arith.cmpi ne, %3, %c0_i32_0 : i32
    scf.if %4 {
      %cst = arith.constant 0.000000e+00 : f32
      %11 = vector.broadcast %cst : f32 to vector<8x128xf32>
      %c0_4 = arith.constant 0 : index
      %c0_5 = arith.constant 0 : index
      %12 = vector.load %arg12[%c0_4, %c0_5] : memref<8x128xf32, #tpu.memory_space<vmem>>, vector<8x128xf32>
      tpu.vector_store %arg12[%c0_4, %c0_5], %11 {strides = array<i32>} : memref<8x128xf32, #tpu.memory_space<vmem>>, vector<8x128xf32>,
      %cst_6 = arith.constant 0.000000e+00 : f32
      %13 = vector.broadcast %cst_6 : f32 to vector<8x128xf32>
      %c0_7 = arith.constant 0 : index
      %c0_8 = arith.constant 0 : index
      %14 = vector.load %arg13[%c0_7, %c0_8] : memref<8x128xf32, #tpu.memory_space<vmem>>, vector<8x128xf32>
      tpu.vector_store %arg13[%c0_7, %c0_8], %13 {strides = array<i32>} : memref<8x128xf32, #tpu.memory_space<vmem>>, vector<8x128xf32>,
    } else {
    }
    %5 = arith.cmpi slt, %0, %1 : i32
    %6 = arith.extui %5 : i1 to i32
    %c0_i32_1 = arith.constant 0 : i32
    %7 = arith.cmpi ne, %6, %c0_i32_1 : i32
    scf.if %7 {
      %c0_4 = arith.constant 0 : index
      %c0_5 = arith.constant 0 : index
      %11 = vector.load %arg2[%c0_4, %c0_5] : memref<64x1xi32, #tpu.memory_space<vmem>>, vector<64x1xi32>
      %12 = tpu.iota {dimensions = array<i32: 1>} : vector<1x128xi32>
      %13 = vector.broadcast %12 : vector<1x128xi32> to vector<64x128xi32>
      %14 = vector.broadcast %11 : vector<64x1xi32> to vector<64x128xi32>
      %15 = arith.cmpi eq, %13, %14 : vector<64x128xi32>
      %16 = arith.extui %15 : vector<64x128xi1> to vector<64x128xi32>
      %17 = arith.sitofp %16 : vector<64x128xi32> to vector<64x128xf32>
      %18 = arith.truncf %17 : vector<64x128xf32> to vector<64x128xbf16>
      %c0_6 = arith.constant 0 : index
      %c0_7 = arith.constant 0 : index
      %19 = vector.load %arg4[%c0_6, %c0_7] : memref<128x128xbf16, #tpu.memory_space<vmem>>, vector<128x128xbf16>
      %cst = arith.constant dense<0.000000e+00> : vector<64x128xf32>
      %20 = tpu.matmul %18, %19, %cst {dimension_numbers = #tpu.dot_dimension_numbers<[1], [0], [0], [1], [0, 0, 1, 1], [], []>} : vector<64x128xbf16>, vector<128x128xbf16>, vector<64x128xf32> -> vector<64x128xf32>
      %21 = arith.truncf %20 : vector<64x128xf32> to vector<64x128xbf16>
      %c0_8 = arith.constant 0 : index
      %c0_9 = arith.constant 0 : index
      %22 = vector.load %arg5[%c0_8, %c0_9] : memref<128x512xbf16, #tpu.memory_space<vmem>>, vector<128x512xbf16>
      %cst_10 = arith.constant dense<0.000000e+00> : vector<64x512xf32>
      %23 = tpu.matmul %21, %22, %cst_10 {dimension_numbers = #tpu.dot_dimension_numbers<[1], [0], [0], [1], [0, 0, 1, 1], [], []>} : vector<64x128xbf16>, vector<128x512xbf16>, vector<64x512xf32> -> vector<64x512xf32>
      %c0_11 = arith.constant 0 : index
      %c0_12 = arith.constant 0 : index
      %24 = vector.load %arg7[%c0_11, %c0_12] : memref<1x512xf32, #tpu.memory_space<vmem>>, vector<1x512xf32>
      %25 = vector.broadcast %24 : vector<1x512xf32> to vector<64x512xf32>
      %26 = arith.addf %23, %25 : vector<64x512xf32>
      %c0_13 = arith.constant 0 : index
      %c0_14 = arith.constant 0 : index
      %27 = vector.load %arg11[%c0_13, %c0_14] : memref<64x512xf32, #tpu.memory_space<vmem>>, vector<64x512xf32>
      tpu.vector_store %arg11[%c0_13, %c0_14], %26 {strides = array<i32>} : memref<64x512xf32, #tpu.memory_space<vmem>>, vector<64x512xf32>,
      %c0_15 = arith.constant 0 : index
      %c0_16 = arith.constant 0 : index
      %28 = vector.load %arg6[%c0_15, %c0_16] : memref<128x512xbf16, #tpu.memory_space<vmem>>, vector<128x512xbf16>
      %c0_17 = arith.constant 0 : index
      %c0_18 = arith.constant 0 : index
      %29 = vector.load %arg3[%c0_17, %c0_18] : memref<8x1xi32, #tpu.memory_space<vmem>>, vector<8x1xi32>
      %c0_19 = arith.constant 0 : index
      %c0_20 = arith.constant 0 : index
      %30 = vector.load %arg12[%c0_19, %c0_20] : memref<8x128xf32, #tpu.memory_space<vmem>>, vector<8x128xf32>
      %c0_21 = arith.constant 0 : index
      %c0_22 = arith.constant 0 : index
      %31 = vector.load %arg13[%c0_21, %c0_22] : memref<8x128xf32, #tpu.memory_space<vmem>>, vector<8x128xf32>
      %c0_i32_23 = arith.constant 0 : i32
      %c8_i32_24 = arith.constant 8 : i32
      %32 = arith.muli %c0_i32_23, %c8_i32_24 : i32
      %33 = tpu.assume_multiple %32, 8 : i32
      %34 = arith.index_cast %33 : i32 to index
      %c0_25 = arith.constant 0 : index
      %35 = vector.load %arg11[%34, %c0_25] : memref<64x512xf32, #tpu.memory_space<vmem>>, vector<8x512xf32>
      %36 = arith.truncf %30 : vector<8x128xf32> to vector<8x128xbf16>
      %cst_26 = arith.constant dense<0.000000e+00> : vector<8x512xf32>
      %37 = tpu.matmul %36, %28, %cst_26 {dimension_numbers = #tpu.dot_dimension_numbers<[1], [0], [0], [1], [0, 0, 1, 1], [], []>} : vector<8x128xbf16>, vector<128x512xbf16>, vector<8x512xf32> -> vector<8x512xf32>
      %38 = arith.addf %35, %37 : vector<8x512xf32>
      %39 = vector.extract_strided_slice %38 {offsets = [0, 0], sizes = [8, 128], strides = [1, 1]} : vector<8x512xf32> to vector<8x128xf32>
      %40 = arith.negf %39 : vector<8x128xf32>
      %41 = math.exp %40 : vector<8x128xf32>
      %cst_27 = arith.constant 1.000000e+00 : f32
      %42 = vector.broadcast %cst_27 : f32 to vector<8x128xf32>
      %43 = arith.addf %42, %41 : vector<8x128xf32>
      %44 = arith.divf %42, %43 : vector<8x128xf32>
      %45 = vector.extract_strided_slice %38 {offsets = [0, 128], sizes = [8, 128], strides = [1, 1]} : vector<8x512xf32> to vector<8x128xf32>
      %46 = arith.negf %45 : vector<8x128xf32>
      %47 = math.exp %46 : vector<8x128xf32>
      %cst_28 = arith.constant 1.000000e+00 : f32
      %48 = vector.broadcast %cst_28 : f32 to vector<8x128xf32>
      %49 = arith.addf %48, %47 : vector<8x128xf32>
      %50 = arith.divf %48, %49 : vector<8x128xf32>
      %51 = vector.extract_strided_slice %38 {offsets = [0, 256], sizes = [8, 128], strides = [1, 1]} : vector<8x512xf32> to vector<8x128xf32>
      %52 = math.tanh %51 : vector<8x128xf32>
      %53 = vector.extract_strided_slice %38 {offsets = [0, 384], sizes = [8, 128], strides = [1, 1]} : vector<8x512xf32> to vector<8x128xf32>
      %54 = arith.negf %53 : vector<8x128xf32>
      %55 = math.exp %54 : vector<8x128xf32>
      %cst_29 = arith.constant 1.000000e+00 : f32
      %56 = vector.broadcast %cst_29 : f32 to vector<8x128xf32>
      %57 = arith.addf %56, %55 : vector<8x128xf32>
      %58 = arith.divf %56, %57 : vector<8x128xf32>
      %59 = arith.mulf %50, %31 : vector<8x128xf32>
      %60 = arith.mulf %44, %52 : vector<8x128xf32>
      %61 = arith.addf %59, %60 : vector<8x128xf32>
      %62 = math.tanh %61 : vector<8x128xf32>
      %63 = arith.mulf %58, %62 : vector<8x128xf32>
      %64 = arith.addi %0, %c0_i32_23 : i32
      %65 = vector.broadcast %64 : i32 to vector<8x1xi32>
      %66 = arith.cmpi sgt, %29, %65 : vector<8x1xi32>
      %67 = vector.shape_cast %66 : vector<8x1xi1> to vector<8x1xi1>
      %68 = vector.broadcast %67 : vector<8x1xi1> to vector<8x128xi1>
      %69 = arith.select %68, %63, %30 : vector<8x128xi1>, vector<8x128xf32>
      %70 = vector.shape_cast %66 : vector<8x1xi1> to vector<8x1xi1>
      %71 = vector.broadcast %70 : vector<8x1xi1> to vector<8x128xi1>
      %72 = arith.select %71, %61, %31 : vector<8x128xi1>, vector<8x128xf32>
      %c1_i32 = arith.constant 1 : i32
      %c8_i32_30 = arith.constant 8 : i32
      %73 = arith.muli %c1_i32, %c8_i32_30 : i32
      %74 = tpu.assume_multiple %73, 8 : i32
      %75 = arith.index_cast %74 : i32 to index
      %c0_31 = arith.constant 0 : index
      %76 = vector.load %arg11[%75, %c0_31] : memref<64x512xf32, #tpu.memory_space<vmem>>, vector<8x512xf32>
      %77 = arith.truncf %69 : vector<8x128xf32> to vector<8x128xbf16>
      %cst_32 = arith.constant dense<0.000000e+00> : vector<8x512xf32>
      %78 = tpu.matmul %77, %28, %cst_32 {dimension_numbers = #tpu.dot_dimension_numbers<[1], [0], [0], [1], [0, 0, 1, 1], [], []>} : vector<8x128xbf16>, vector<128x512xbf16>, vector<8x512xf32> -> vector<8x512xf32>
      %79 = arith.addf %76, %78 : vector<8x512xf32>
      %80 = vector.extract_strided_slice %79 {offsets = [0, 0], sizes = [8, 128], strides = [1, 1]} : vector<8x512xf32> to vector<8x128xf32>
      %81 = arith.negf %80 : vector<8x128xf32>
      %82 = math.exp %81 : vector<8x128xf32>
      %cst_33 = arith.constant 1.000000e+00 : f32
      %83 = vector.broadcast %cst_33 : f32 to vector<8x128xf32>
      %84 = arith.addf %83, %82 : vector<8x128xf32>
      %85 = arith.divf %83, %84 : vector<8x128xf32>
      %86 = vector.extract_strided_slice %79 {offsets = [0, 128], sizes = [8, 128], strides = [1, 1]} : vector<8x512xf32> to vector<8x128xf32>
      %87 = arith.negf %86 : vector<8x128xf32>
      %88 = math.exp %87 : vector<8x128xf32>
      %cst_34 = arith.constant 1.000000e+00 : f32
      %89 = vector.broadcast %cst_34 : f32 to vector<8x128xf32>
      %90 = arith.addf %89, %88 : vector<8x128xf32>
      %91 = arith.divf %89, %90 : vector<8x128xf32>
      %92 = vector.extract_strided_slice %79 {offsets = [0, 256], sizes = [8, 128], strides = [1, 1]} : vector<8x512xf32> to vector<8x128xf32>
      %93 = math.tanh %92 : vector<8x128xf32>
      %94 = vector.extract_strided_slice %79 {offsets = [0, 384], sizes = [8, 128], strides = [1, 1]} : vector<8x512xf32> to vector<8x128xf32>
      %95 = arith.negf %94 : vector<8x128xf32>
      %96 = math.exp %95 : vector<8x128xf32>
      %cst_35 = arith.constant 1.000000e+00 : f32
      %97 = vector.broadcast %cst_35 : f32 to vector<8x128xf32>
      %98 = arith.addf %97, %96 : vector<8x128xf32>
      %99 = arith.divf %97, %98 : vector<8x128xf32>
      %100 = arith.mulf %91, %72 : vector<8x128xf32>
      %101 = arith.mulf %85, %93 : vector<8x128xf32>
      %102 = arith.addf %100, %101 : vector<8x128xf32>
      %103 = math.tanh %102 : vector<8x128xf32>
      %104 = arith.mulf %99, %103 : vector<8x128xf32>
      %105 = arith.addi %0, %c1_i32 : i32
      %106 = vector.broadcast %105 : i32 to vector<8x1xi32>
      %107 = arith.cmpi sgt, %29, %106 : vector<8x1xi32>
      %108 = vector.shape_cast %107 : vector<8x1xi1> to vector<8x1xi1>
      %109 = vector.broadcast %108 : vector<8x1xi1> to vector<8x128xi1>
      %110 = arith.select %109, %104, %69 : vector<8x128xi1>, vector<8x128xf32>
      %111 = vector.shape_cast %107 : vector<8x1xi1> to vector<8x1xi1>
      %112 = vector.broadcast %111 : vector<8x1xi1> to vector<8x128xi1>
      %113 = arith.select %112, %102, %72 : vector<8x128xi1>, vector<8x128xf32>
      %c2_i32 = arith.constant 2 : i32
      %c8_i32_36 = arith.constant 8 : i32
      %114 = arith.muli %c2_i32, %c8_i32_36 : i32
      %115 = tpu.assume_multiple %114, 8 : i32
      %116 = arith.index_cast %115 : i32 to index
      %c0_37 = arith.constant 0 : index
      %117 = vector.load %arg11[%116, %c0_37] : memref<64x512xf32, #tpu.memory_space<vmem>>, vector<8x512xf32>
      %118 = arith.truncf %110 : vector<8x128xf32> to vector<8x128xbf16>
      %cst_38 = arith.constant dense<0.000000e+00> : vector<8x512xf32>
      %119 = tpu.matmul %118, %28, %cst_38 {dimension_numbers = #tpu.dot_dimension_numbers<[1], [0], [0], [1], [0, 0, 1, 1], [], []>} : vector<8x128xbf16>, vector<128x512xbf16>, vector<8x512xf32> -> vector<8x512xf32>
      %120 = arith.addf %117, %119 : vector<8x512xf32>
      %121 = vector.extract_strided_slice %120 {offsets = [0, 0], sizes = [8, 128], strides = [1, 1]} : vector<8x512xf32> to vector<8x128xf32>
      %122 = arith.negf %121 : vector<8x128xf32>
      %123 = math.exp %122 : vector<8x128xf32>
      %cst_39 = arith.constant 1.000000e+00 : f32
      %124 = vector.broadcast %cst_39 : f32 to vector<8x128xf32>
      %125 = arith.addf %124, %123 : vector<8x128xf32>
      %126 = arith.divf %124, %125 : vector<8x128xf32>
      %127 = vector.extract_strided_slice %120 {offsets = [0, 128], sizes = [8, 128], strides = [1, 1]} : vector<8x512xf32> to vector<8x128xf32>
      %128 = arith.negf %127 : vector<8x128xf32>
      %129 = math.exp %128 : vector<8x128xf32>
      %cst_40 = arith.constant 1.000000e+00 : f32
      %130 = vector.broadcast %cst_40 : f32 to vector<8x128xf32>
      %131 = arith.addf %130, %129 : vector<8x128xf32>
      %132 = arith.divf %130, %131 : vector<8x128xf32>
      %133 = vector.extract_strided_slice %120 {offsets = [0, 256], sizes = [8, 128], strides = [1, 1]} : vector<8x512xf32> to vector<8x128xf32>
      %134 = math.tanh %133 : vector<8x128xf32>
      %135 = vector.extract_strided_slice %120 {offsets = [0, 384], sizes = [8, 128], strides = [1, 1]} : vector<8x512xf32> to vector<8x128xf32>
      %136 = arith.negf %135 : vector<8x128xf32>
      %137 = math.exp %136 : vector<8x128xf32>
      %cst_41 = arith.constant 1.000000e+00 : f32
      %138 = vector.broadcast %cst_41 : f32 to vector<8x128xf32>
      %139 = arith.addf %138, %137 : vector<8x128xf32>
      %140 = arith.divf %138, %139 : vector<8x128xf32>
      %141 = arith.mulf %132, %113 : vector<8x128xf32>
      %142 = arith.mulf %126, %134 : vector<8x128xf32>
      %143 = arith.addf %141, %142 : vector<8x128xf32>
      %144 = math.tanh %143 : vector<8x128xf32>
      %145 = arith.mulf %140, %144 : vector<8x128xf32>
      %146 = arith.addi %0, %c2_i32 : i32
      %147 = vector.broadcast %146 : i32 to vector<8x1xi32>
      %148 = arith.cmpi sgt, %29, %147 : vector<8x1xi32>
      %149 = vector.shape_cast %148 : vector<8x1xi1> to vector<8x1xi1>
      %150 = vector.broadcast %149 : vector<8x1xi1> to vector<8x128xi1>
      %151 = arith.select %150, %145, %110 : vector<8x128xi1>, vector<8x128xf32>
      %152 = vector.shape_cast %148 : vector<8x1xi1> to vector<8x1xi1>
      %153 = vector.broadcast %152 : vector<8x1xi1> to vector<8x128xi1>
      %154 = arith.select %153, %143, %113 : vector<8x128xi1>, vector<8x128xf32>
      %c3_i32 = arith.constant 3 : i32
      %c8_i32_42 = arith.constant 8 : i32
      %155 = arith.muli %c3_i32, %c8_i32_42 : i32
      %156 = tpu.assume_multiple %155, 8 : i32
      %157 = arith.index_cast %156 : i32 to index
      %c0_43 = arith.constant 0 : index
      %158 = vector.load %arg11[%157, %c0_43] : memref<64x512xf32, #tpu.memory_space<vmem>>, vector<8x512xf32>
      %159 = arith.truncf %151 : vector<8x128xf32> to vector<8x128xbf16>
      %cst_44 = arith.constant dense<0.000000e+00> : vector<8x512xf32>
      %160 = tpu.matmul %159, %28, %cst_44 {dimension_numbers = #tpu.dot_dimension_numbers<[1], [0], [0], [1], [0, 0, 1, 1], [], []>} : vector<8x128xbf16>, vector<128x512xbf16>, vector<8x512xf32> -> vector<8x512xf32>
      %161 = arith.addf %158, %160 : vector<8x512xf32>
      %162 = vector.extract_strided_slice %161 {offsets = [0, 0], sizes = [8, 128], strides = [1, 1]} : vector<8x512xf32> to vector<8x128xf32>
      %163 = arith.negf %162 : vector<8x128xf32>
      %164 = math.exp %163 : vector<8x128xf32>
      %cst_45 = arith.constant 1.000000e+00 : f32
      %165 = vector.broadcast %cst_45 : f32 to vector<8x128xf32>
      %166 = arith.addf %165, %164 : vector<8x128xf32>
      %167 = arith.divf %165, %166 : vector<8x128xf32>
      %168 = vector.extract_strided_slice %161 {offsets = [0, 128], sizes = [8, 128], strides = [1, 1]} : vector<8x512xf32> to vector<8x128xf32>
      %169 = arith.negf %168 : vector<8x128xf32>
      %170 = math.exp %169 : vector<8x128xf32>
      %cst_46 = arith.constant 1.000000e+00 : f32
      %171 = vector.broadcast %cst_46 : f32 to vector<8x128xf32>
      %172 = arith.addf %171, %170 : vector<8x128xf32>
      %173 = arith.divf %171, %172 : vector<8x128xf32>
      %174 = vector.extract_strided_slice %161 {offsets = [0, 256], sizes = [8, 128], strides = [1, 1]} : vector<8x512xf32> to vector<8x128xf32>
      %175 = math.tanh %174 : vector<8x128xf32>
      %176 = vector.extract_strided_slice %161 {offsets = [0, 384], sizes = [8, 128], strides = [1, 1]} : vector<8x512xf32> to vector<8x128xf32>
      %177 = arith.negf %176 : vector<8x128xf32>
      %178 = math.exp %177 : vector<8x128xf32>
      %cst_47 = arith.constant 1.000000e+00 : f32
      %179 = vector.broadcast %cst_47 : f32 to vector<8x128xf32>
      %180 = arith.addf %179, %178 : vector<8x128xf32>
      %181 = arith.divf %179, %180 : vector<8x128xf32>
      %182 = arith.mulf %173, %154 : vector<8x128xf32>
      %183 = arith.mulf %167, %175 : vector<8x128xf32>
      %184 = arith.addf %182, %183 : vector<8x128xf32>
      %185 = math.tanh %184 : vector<8x128xf32>
      %186 = arith.mulf %181, %185 : vector<8x128xf32>
      %187 = arith.addi %0, %c3_i32 : i32
      %188 = vector.broadcast %187 : i32 to vector<8x1xi32>
      %189 = arith.cmpi sgt, %29, %188 : vector<8x1xi32>
      %190 = vector.shape_cast %189 : vector<8x1xi1> to vector<8x1xi1>
      %191 = vector.broadcast %190 : vector<8x1xi1> to vector<8x128xi1>
      %192 = arith.select %191, %186, %151 : vector<8x128xi1>, vector<8x128xf32>
      %193 = vector.shape_cast %189 : vector<8x1xi1> to vector<8x1xi1>
      %194 = vector.broadcast %193 : vector<8x1xi1> to vector<8x128xi1>
      %195 = arith.select %194, %184, %154 : vector<8x128xi1>, vector<8x128xf32>
      %c4_i32 = arith.constant 4 : i32
      %c8_i32_48 = arith.constant 8 : i32
      %196 = arith.muli %c4_i32, %c8_i32_48 : i32
      %197 = tpu.assume_multiple %196, 8 : i32
      %198 = arith.index_cast %197 : i32 to index
      %c0_49 = arith.constant 0 : index
      %199 = vector.load %arg11[%198, %c0_49] : memref<64x512xf32, #tpu.memory_space<vmem>>, vector<8x512xf32>
      %200 = arith.truncf %192 : vector<8x128xf32> to vector<8x128xbf16>
      %cst_50 = arith.constant dense<0.000000e+00> : vector<8x512xf32>
      %201 = tpu.matmul %200, %28, %cst_50 {dimension_numbers = #tpu.dot_dimension_numbers<[1], [0], [0], [1], [0, 0, 1, 1], [], []>} : vector<8x128xbf16>, vector<128x512xbf16>, vector<8x512xf32> -> vector<8x512xf32>
      %202 = arith.addf %199, %201 : vector<8x512xf32>
      %203 = vector.extract_strided_slice %202 {offsets = [0, 0], sizes = [8, 128], strides = [1, 1]} : vector<8x512xf32> to vector<8x128xf32>
      %204 = arith.negf %203 : vector<8x128xf32>
      %205 = math.exp %204 : vector<8x128xf32>
      %cst_51 = arith.constant 1.000000e+00 : f32
      %206 = vector.broadcast %cst_51 : f32 to vector<8x128xf32>
      %207 = arith.addf %206, %205 : vector<8x128xf32>
      %208 = arith.divf %206, %207 : vector<8x128xf32>
      %209 = vector.extract_strided_slice %202 {offsets = [0, 128], sizes = [8, 128], strides = [1, 1]} : vector<8x512xf32> to vector<8x128xf32>
      %210 = arith.negf %209 : vector<8x128xf32>
      %211 = math.exp %210 : vector<8x128xf32>
      %cst_52 = arith.constant 1.000000e+00 : f32
      %212 = vector.broadcast %cst_52 : f32 to vector<8x128xf32>
      %213 = arith.addf %212, %211 : vector<8x128xf32>
      %214 = arith.divf %212, %213 : vector<8x128xf32>
      %215 = vector.extract_strided_slice %202 {offsets = [0, 256], sizes = [8, 128], strides = [1, 1]} : vector<8x512xf32> to vector<8x128xf32>
      %216 = math.tanh %215 : vector<8x128xf32>
      %217 = vector.extract_strided_slice %202 {offsets = [0, 384], sizes = [8, 128], strides = [1, 1]} : vector<8x512xf32> to vector<8x128xf32>
      %218 = arith.negf %217 : vector<8x128xf32>
      %219 = math.exp %218 : vector<8x128xf32>
      %cst_53 = arith.constant 1.000000e+00 : f32
      %220 = vector.broadcast %cst_53 : f32 to vector<8x128xf32>
      %221 = arith.addf %220, %219 : vector<8x128xf32>
      %222 = arith.divf %220, %221 : vector<8x128xf32>
      %223 = arith.mulf %214, %195 : vector<8x128xf32>
      %224 = arith.mulf %208, %216 : vector<8x128xf32>
      %225 = arith.addf %223, %224 : vector<8x128xf32>
      %226 = math.tanh %225 : vector<8x128xf32>
      %227 = arith.mulf %222, %226 : vector<8x128xf32>
      %228 = arith.addi %0, %c4_i32 : i32
      %229 = vector.broadcast %228 : i32 to vector<8x1xi32>
      %230 = arith.cmpi sgt, %29, %229 : vector<8x1xi32>
      %231 = vector.shape_cast %230 : vector<8x1xi1> to vector<8x1xi1>
      %232 = vector.broadcast %231 : vector<8x1xi1> to vector<8x128xi1>
      %233 = arith.select %232, %227, %192 : vector<8x128xi1>, vector<8x128xf32>
      %234 = vector.shape_cast %230 : vector<8x1xi1> to vector<8x1xi1>
      %235 = vector.broadcast %234 : vector<8x1xi1> to vector<8x128xi1>
      %236 = arith.select %235, %225, %195 : vector<8x128xi1>, vector<8x128xf32>
      %c5_i32 = arith.constant 5 : i32
      %c8_i32_54 = arith.constant 8 : i32
      %237 = arith.muli %c5_i32, %c8_i32_54 : i32
      %238 = tpu.assume_multiple %237, 8 : i32
      %239 = arith.index_cast %238 : i32 to index
      %c0_55 = arith.constant 0 : index
      %240 = vector.load %arg11[%239, %c0_55] : memref<64x512xf32, #tpu.memory_space<vmem>>, vector<8x512xf32>
      %241 = arith.truncf %233 : vector<8x128xf32> to vector<8x128xbf16>
      %cst_56 = arith.constant dense<0.000000e+00> : vector<8x512xf32>
      %242 = tpu.matmul %241, %28, %cst_56 {dimension_numbers = #tpu.dot_dimension_numbers<[1], [0], [0], [1], [0, 0, 1, 1], [], []>} : vector<8x128xbf16>, vector<128x512xbf16>, vector<8x512xf32> -> vector<8x512xf32>
      %243 = arith.addf %240, %242 : vector<8x512xf32>
      %244 = vector.extract_strided_slice %243 {offsets = [0, 0], sizes = [8, 128], strides = [1, 1]} : vector<8x512xf32> to vector<8x128xf32>
      %245 = arith.negf %244 : vector<8x128xf32>
      %246 = math.exp %245 : vector<8x128xf32>
      %cst_57 = arith.constant 1.000000e+00 : f32
      %247 = vector.broadcast %cst_57 : f32 to vector<8x128xf32>
      %248 = arith.addf %247, %246 : vector<8x128xf32>
      %249 = arith.divf %247, %248 : vector<8x128xf32>
      %250 = vector.extract_strided_slice %243 {offsets = [0, 128], sizes = [8, 128], strides = [1, 1]} : vector<8x512xf32> to vector<8x128xf32>
      %251 = arith.negf %250 : vector<8x128xf32>
      %252 = math.exp %251 : vector<8x128xf32>
      %cst_58 = arith.constant 1.000000e+00 : f32
      %253 = vector.broadcast %cst_58 : f32 to vector<8x128xf32>
      %254 = arith.addf %253, %252 : vector<8x128xf32>
      %255 = arith.divf %253, %254 : vector<8x128xf32>
      %256 = vector.extract_strided_slice %243 {offsets = [0, 256], sizes = [8, 128], strides = [1, 1]} : vector<8x512xf32> to vector<8x128xf32>
      %257 = math.tanh %256 : vector<8x128xf32>
      %258 = vector.extract_strided_slice %243 {offsets = [0, 384], sizes = [8, 128], strides = [1, 1]} : vector<8x512xf32> to vector<8x128xf32>
      %259 = arith.negf %258 : vector<8x128xf32>
      %260 = math.exp %259 : vector<8x128xf32>
      %cst_59 = arith.constant 1.000000e+00 : f32
      %261 = vector.broadcast %cst_59 : f32 to vector<8x128xf32>
      %262 = arith.addf %261, %260 : vector<8x128xf32>
      %263 = arith.divf %261, %262 : vector<8x128xf32>
      %264 = arith.mulf %255, %236 : vector<8x128xf32>
      %265 = arith.mulf %249, %257 : vector<8x128xf32>
      %266 = arith.addf %264, %265 : vector<8x128xf32>
      %267 = math.tanh %266 : vector<8x128xf32>
      %268 = arith.mulf %263, %267 : vector<8x128xf32>
      %269 = arith.addi %0, %c5_i32 : i32
      %270 = vector.broadcast %269 : i32 to vector<8x1xi32>
      %271 = arith.cmpi sgt, %29, %270 : vector<8x1xi32>
      %272 = vector.shape_cast %271 : vector<8x1xi1> to vector<8x1xi1>
      %273 = vector.broadcast %272 : vector<8x1xi1> to vector<8x128xi1>
      %274 = arith.select %273, %268, %233 : vector<8x128xi1>, vector<8x128xf32>
      %275 = vector.shape_cast %271 : vector<8x1xi1> to vector<8x1xi1>
      %276 = vector.broadcast %275 : vector<8x1xi1> to vector<8x128xi1>
      %277 = arith.select %276, %266, %236 : vector<8x128xi1>, vector<8x128xf32>
      %c6_i32 = arith.constant 6 : i32
      %c8_i32_60 = arith.constant 8 : i32
      %278 = arith.muli %c6_i32, %c8_i32_60 : i32
      %279 = tpu.assume_multiple %278, 8 : i32
      %280 = arith.index_cast %279 : i32 to index
      %c0_61 = arith.constant 0 : index
      %281 = vector.load %arg11[%280, %c0_61] : memref<64x512xf32, #tpu.memory_space<vmem>>, vector<8x512xf32>
      %282 = arith.truncf %274 : vector<8x128xf32> to vector<8x128xbf16>
      %cst_62 = arith.constant dense<0.000000e+00> : vector<8x512xf32>
      %283 = tpu.matmul %282, %28, %cst_62 {dimension_numbers = #tpu.dot_dimension_numbers<[1], [0], [0], [1], [0, 0, 1, 1], [], []>} : vector<8x128xbf16>, vector<128x512xbf16>, vector<8x512xf32> -> vector<8x512xf32>
      %284 = arith.addf %281, %283 : vector<8x512xf32>
      %285 = vector.extract_strided_slice %284 {offsets = [0, 0], sizes = [8, 128], strides = [1, 1]} : vector<8x512xf32> to vector<8x128xf32>
      %286 = arith.negf %285 : vector<8x128xf32>
      %287 = math.exp %286 : vector<8x128xf32>
      %cst_63 = arith.constant 1.000000e+00 : f32
      %288 = vector.broadcast %cst_63 : f32 to vector<8x128xf32>
      %289 = arith.addf %288, %287 : vector<8x128xf32>
      %290 = arith.divf %288, %289 : vector<8x128xf32>
      %291 = vector.extract_strided_slice %284 {offsets = [0, 128], sizes = [8, 128], strides = [1, 1]} : vector<8x512xf32> to vector<8x128xf32>
      %292 = arith.negf %291 : vector<8x128xf32>
      %293 = math.exp %292 : vector<8x128xf32>
      %cst_64 = arith.constant 1.000000e+00 : f32
      %294 = vector.broadcast %cst_64 : f32 to vector<8x128xf32>
      %295 = arith.addf %294, %293 : vector<8x128xf32>
      %296 = arith.divf %294, %295 : vector<8x128xf32>
      %297 = vector.extract_strided_slice %284 {offsets = [0, 256], sizes = [8, 128], strides = [1, 1]} : vector<8x512xf32> to vector<8x128xf32>
      %298 = math.tanh %297 : vector<8x128xf32>
      %299 = vector.extract_strided_slice %284 {offsets = [0, 384], sizes = [8, 128], strides = [1, 1]} : vector<8x512xf32> to vector<8x128xf32>
      %300 = arith.negf %299 : vector<8x128xf32>
      %301 = math.exp %300 : vector<8x128xf32>
      %cst_65 = arith.constant 1.000000e+00 : f32
      %302 = vector.broadcast %cst_65 : f32 to vector<8x128xf32>
      %303 = arith.addf %302, %301 : vector<8x128xf32>
      %304 = arith.divf %302, %303 : vector<8x128xf32>
      %305 = arith.mulf %296, %277 : vector<8x128xf32>
      %306 = arith.mulf %290, %298 : vector<8x128xf32>
      %307 = arith.addf %305, %306 : vector<8x128xf32>
      %308 = math.tanh %307 : vector<8x128xf32>
      %309 = arith.mulf %304, %308 : vector<8x128xf32>
      %310 = arith.addi %0, %c6_i32 : i32
      %311 = vector.broadcast %310 : i32 to vector<8x1xi32>
      %312 = arith.cmpi sgt, %29, %311 : vector<8x1xi32>
      %313 = vector.shape_cast %312 : vector<8x1xi1> to vector<8x1xi1>
      %314 = vector.broadcast %313 : vector<8x1xi1> to vector<8x128xi1>
      %315 = arith.select %314, %309, %274 : vector<8x128xi1>, vector<8x128xf32>
      %316 = vector.shape_cast %312 : vector<8x1xi1> to vector<8x1xi1>
      %317 = vector.broadcast %316 : vector<8x1xi1> to vector<8x128xi1>
      %318 = arith.select %317, %307, %277 : vector<8x128xi1>, vector<8x128xf32>
      %c7_i32 = arith.constant 7 : i32
      %c8_i32_66 = arith.constant 8 : i32
      %319 = arith.muli %c7_i32, %c8_i32_66 : i32
      %320 = tpu.assume_multiple %319, 8 : i32
      %321 = arith.index_cast %320 : i32 to index
      %c0_67 = arith.constant 0 : index
      %322 = vector.load %arg11[%321, %c0_67] : memref<64x512xf32, #tpu.memory_space<vmem>>, vector<8x512xf32>
      %323 = arith.truncf %315 : vector<8x128xf32> to vector<8x128xbf16>
      %cst_68 = arith.constant dense<0.000000e+00> : vector<8x512xf32>
      %324 = tpu.matmul %323, %28, %cst_68 {dimension_numbers = #tpu.dot_dimension_numbers<[1], [0], [0], [1], [0, 0, 1, 1], [], []>} : vector<8x128xbf16>, vector<128x512xbf16>, vector<8x512xf32> -> vector<8x512xf32>
      %325 = arith.addf %322, %324 : vector<8x512xf32>
      %326 = vector.extract_strided_slice %325 {offsets = [0, 0], sizes = [8, 128], strides = [1, 1]} : vector<8x512xf32> to vector<8x128xf32>
      %327 = arith.negf %326 : vector<8x128xf32>
      %328 = math.exp %327 : vector<8x128xf32>
      %cst_69 = arith.constant 1.000000e+00 : f32
      %329 = vector.broadcast %cst_69 : f32 to vector<8x128xf32>
      %330 = arith.addf %329, %328 : vector<8x128xf32>
      %331 = arith.divf %329, %330 : vector<8x128xf32>
      %332 = vector.extract_strided_slice %325 {offsets = [0, 128], sizes = [8, 128], strides = [1, 1]} : vector<8x512xf32> to vector<8x128xf32>
      %333 = arith.negf %332 : vector<8x128xf32>
      %334 = math.exp %333 : vector<8x128xf32>
      %cst_70 = arith.constant 1.000000e+00 : f32
      %335 = vector.broadcast %cst_70 : f32 to vector<8x128xf32>
      %336 = arith.addf %335, %334 : vector<8x128xf32>
      %337 = arith.divf %335, %336 : vector<8x128xf32>
      %338 = vector.extract_strided_slice %325 {offsets = [0, 256], sizes = [8, 128], strides = [1, 1]} : vector<8x512xf32> to vector<8x128xf32>
      %339 = math.tanh %338 : vector<8x128xf32>
      %340 = vector.extract_strided_slice %325 {offsets = [0, 384], sizes = [8, 128], strides = [1, 1]} : vector<8x512xf32> to vector<8x128xf32>
      %341 = arith.negf %340 : vector<8x128xf32>
      %342 = math.exp %341 : vector<8x128xf32>
      %cst_71 = arith.constant 1.000000e+00 : f32
      %343 = vector.broadcast %cst_71 : f32 to vector<8x128xf32>
      %344 = arith.addf %343, %342 : vector<8x128xf32>
      %345 = arith.divf %343, %344 : vector<8x128xf32>
      %346 = arith.mulf %337, %318 : vector<8x128xf32>
      %347 = arith.mulf %331, %339 : vector<8x128xf32>
      %348 = arith.addf %346, %347 : vector<8x128xf32>
      %349 = math.tanh %348 : vector<8x128xf32>
      %350 = arith.mulf %345, %349 : vector<8x128xf32>
      %351 = arith.addi %0, %c7_i32 : i32
      %352 = vector.broadcast %351 : i32 to vector<8x1xi32>
      %353 = arith.cmpi sgt, %29, %352 : vector<8x1xi32>
      %354 = vector.shape_cast %353 : vector<8x1xi1> to vector<8x1xi1>
      %355 = vector.broadcast %354 : vector<8x1xi1> to vector<8x128xi1>
      %356 = arith.select %355, %350, %315 : vector<8x128xi1>, vector<8x128xf32>
      %357 = vector.shape_cast %353 : vector<8x1xi1> to vector<8x1xi1>
      %358 = vector.broadcast %357 : vector<8x1xi1> to vector<8x128xi1>
      %359 = arith.select %358, %348, %318 : vector<8x128xi1>, vector<8x128xf32>
      %c8_i32_72 = arith.constant 8 : i32
      %c0_73 = arith.constant 0 : index
      %c0_74 = arith.constant 0 : index
      %360 = vector.load %arg12[%c0_73, %c0_74] : memref<8x128xf32, #tpu.memory_space<vmem>>, vector<8x128xf32>
      tpu.vector_store %arg12[%c0_73, %c0_74], %356 {strides = array<i32>} : memref<8x128xf32, #tpu.memory_space<vmem>>, vector<8x128xf32>,
      %c0_75 = arith.constant 0 : index
      %c0_76 = arith.constant 0 : index
      %361 = vector.load %arg13[%c0_75, %c0_76] : memref<8x128xf32, #tpu.memory_space<vmem>>, vector<8x128xf32>
      tpu.vector_store %arg13[%c0_75, %c0_76], %359 {strides = array<i32>} : memref<8x128xf32, #tpu.memory_space<vmem>>, vector<8x128xf32>,
    } else {
    }
    %c0_i32_2 = arith.constant 0 : i32
    %8 = arith.cmpi eq, %arg0, %c0_i32_2 : i32
    %9 = arith.extui %8 : i1 to i32
    %c0_i32_3 = arith.constant 0 : i32
    %10 = arith.cmpi ne, %9, %c0_i32_3 : i32
    scf.if %10 {
      %c0_4 = arith.constant 0 : index
      %c0_5 = arith.constant 0 : index
      %11 = vector.load %arg3[%c0_4, %c0_5] : memref<8x1xi32, #tpu.memory_space<vmem>>, vector<8x1xi32>
      %12 = vector.broadcast %1 : i32 to vector<8x1xi32>
      %13 = arith.cmpi eq, %11, %12 : vector<8x1xi32>
      %c0_6 = arith.constant 0 : index
      %c0_7 = arith.constant 0 : index
      %14 = vector.load %arg12[%c0_6, %c0_7] : memref<8x128xf32, #tpu.memory_space<vmem>>, vector<8x128xf32>
      %cst = arith.constant 0.000000e+00 : f32
      %15 = vector.shape_cast %13 : vector<8x1xi1> to vector<8x1xi1>
      %16 = vector.broadcast %15 : vector<8x1xi1> to vector<8x128xi1>
      %17 = vector.broadcast %cst : f32 to vector<8x128xf32>
      %18 = arith.select %16, %14, %17 : vector<8x128xi1>, vector<8x128xf32>
      %cst_8 = arith.constant 0.000000e+00 : f32
      %19 = vector.broadcast %cst_8 : f32 to vector<8x128xf32>
      %20 = arith.cmpf oge, %18, %19 : vector<8x128xf32>
      %cst_9 = arith.constant 2.000000e-01 : f32
      %21 = vector.broadcast %cst_9 : f32 to vector<8x128xf32>
      %22 = arith.mulf %21, %18 : vector<8x128xf32>
      %23 = arith.select %20, %18, %22 : vector<8x128xi1>, vector<8x128xf32>
      %c0_10 = arith.constant 0 : index
      %c0_11 = arith.constant 0 : index
      %24 = vector.load %arg8[%c0_10, %c0_11] : memref<1x128xf32, #tpu.memory_space<vmem>>, vector<1x128xf32>
      %25 = vector.broadcast %24 : vector<1x128xf32> to vector<8x128xf32>
      %26 = arith.mulf %23, %25 : vector<8x128xf32>
      %cst_12 = arith.constant dense<0.000000e+00> : vector<8xf32>
      %27 = vector.multi_reduction <add>, %26, %cst_12 [1] : vector<8x128xf32> to vector<8xf32>
      %28 = vector.shape_cast %27 : vector<8xf32> to vector<8x1xf32>
      %c0_13 = arith.constant 0 : index
      %c0_14 = arith.constant 0 : index
      %29 = vector.load %arg9[%c0_13, %c0_14] : memref<1x1xf32, #tpu.memory_space<vmem>>, vector<1x1xf32>
      %30 = vector.broadcast %29 : vector<1x1xf32> to vector<8x1xf32>
      %31 = arith.addf %28, %30 : vector<8x1xf32>
      %32 = arith.negf %31 : vector<8x1xf32>
      %33 = math.exp %32 : vector<8x1xf32>
      %cst_15 = arith.constant 1.000000e+00 : f32
      %34 = vector.broadcast %cst_15 : f32 to vector<8x1xf32>
      %35 = arith.addf %34, %33 : vector<8x1xf32>
      %36 = arith.divf %34, %35 : vector<8x1xf32>
      %c0_16 = arith.constant 0 : index
      %c0_17 = arith.constant 0 : index
      %37 = vector.load %arg10[%c0_16, %c0_17] : memref<8x1xf32, #tpu.memory_space<vmem>>, vector<8x1xf32>
      tpu.vector_store %arg10[%c0_16, %c0_17], %36 {strides = array<i32>} : memref<8x1xf32, #tpu.memory_space<vmem>>, vector<8x1xf32>,
    } else {
    }
    return
  }
  func.func @transform_0(%arg0: i32, %arg1: memref<1xi32, #tpu.memory_space<smem>>) -> (i32, i32) {
    %c0_i32 = arith.constant 0 : i32
    %c0_i32_0 = arith.constant 0 : i32
    return %arg0, %c0_i32 : i32, i32
  }
  func.func @transform_1(%arg0: i32, %arg1: memref<1xi32, #tpu.memory_space<smem>>) -> (i32, i32) {
    %c0_i32 = arith.constant 0 : i32
    %c0_i32_0 = arith.constant 0 : i32
    %c0_i32_1 = arith.constant 0 : i32
    return %c0_i32, %c0_i32_0 : i32, i32
  }
  func.func @transform_2(%arg0: i32, %arg1: memref<1xi32, #tpu.memory_space<smem>>) -> (i32, i32) {
    %c0_i32 = arith.constant 0 : i32
    %c0_i32_0 = arith.constant 0 : i32
    %c0_i32_1 = arith.constant 0 : i32
    return %c0_i32, %c0_i32_0 : i32, i32
  }
  func.func @transform_3(%arg0: i32, %arg1: memref<1xi32, #tpu.memory_space<smem>>) -> (i32, i32) {
    %c0_i32 = arith.constant 0 : i32
    %c0_i32_0 = arith.constant 0 : i32
    %c0_i32_1 = arith.constant 0 : i32
    return %c0_i32, %c0_i32_0 : i32, i32
  }
  func.func @transform_4(%arg0: i32, %arg1: memref<1xi32, #tpu.memory_space<smem>>) -> (i32, i32) {
    %c0_i32 = arith.constant 0 : i32
    %c0_i32_0 = arith.constant 0 : i32
    %c0_i32_1 = arith.constant 0 : i32
    return %c0_i32, %c0_i32_0 : i32, i32
  }
  func.func @transform_5(%arg0: i32, %arg1: memref<1xi32, #tpu.memory_space<smem>>) -> (i32, i32) {
    %c0_i32 = arith.constant 0 : i32
    %c0_i32_0 = arith.constant 0 : i32
    %c0_i32_1 = arith.constant 0 : i32
    return %c0_i32, %c0_i32_0 : i32, i32
  }
  func.func @transform_6(%arg0: i32, %arg1: memref<1xi32, #tpu.memory_space<smem>>) -> (i32, i32) {
    %c0_i32 = arith.constant 0 : i32
    %c0_i32_0 = arith.constant 0 : i32
    %c0_i32_1 = arith.constant 0 : i32
    return %c0_i32, %c0_i32_0 : i32, i32
  }
  func.func @transform_7(%arg0: i32, %arg1: memref<1xi32, #tpu.memory_space<smem>>) -> (i32, i32) {
    %c0_i32 = arith.constant 0 : i32
    %c0_i32_0 = arith.constant 0 : i32
    %c0_i32_1 = arith.constant 0 : i32
    return %c0_i32, %c0_i32_0 : i32, i32
  }
  func.func @transform_8(%arg0: i32, %arg1: memref<1xi32, #tpu.memory_space<smem>>) -> (i32, i32) {
    %c0_i32 = arith.constant 0 : i32
    %c0_i32_0 = arith.constant 0 : i32
    %c0_i32_1 = arith.constant 0 : i32
    return %c0_i32, %c0_i32_0 : i32, i32
  }
}

</mosaic_0001>

<llo_original>
// kernel: tpu_custom_call.1
$region0: #{tpu_custom_call.1}
  #allocation0 [shape = 'u32[]', space=smem, size = 0x4, offset = 0x4, fixed_abs, tag = 'smem constant byte address 0x4 - core index']
  #allocation1 [shape = 'u32[72,128]{1,0:T(1,128)}', space=vmem, size = 0x9000, scoped, tag = 'internal scratch']
  #allocation2 [shape = 'f32[64,512]{1,0:T(8,128)}', space=vmem, size = 0x20000, scoped, tag = 'scratch operand']
  #allocation3 [shape = 'f32[8,128]{1,0:T(8,128)}', space=vmem, size = 0x1000, scoped, tag = 'scratch operand']
  #allocation4 [shape = 'f32[8,128]{1,0:T(8,128)}', space=vmem, size = 0x1000, scoped, tag = 'scratch operand']
  #allocation5 [shape = 's32[1]{0}', space=sflag, size = 0x4, scoped, tag = 'scoped memory for tpu_custom_call.1']
  #allocation6 [shape = 's32[1]{0:T(128)S(6)}', space=smem, size = 0x200, scoped, tag = 'prefetched SMEM operand 0']
  #allocation7 [shape = 'f32[1,1]{1,0:T(1,128)S(1)}', space=vmem, size = 0x200, scoped, tag = 'scoped memory for tpu_custom_call.1']
  %s0 = inlined_call_operand.<no memory space> [shape: s32[1], index: 0, kind: input, shape index: {}]
  %s1 = inlined_call_operand.vmem [shape: s32[64,1], index: 1, kind: input, shape index: {}]
  %s2 = inlined_call_operand.vmem [shape: s32[8,1], index: 2, kind: input, shape index: {}]
  %s3 = inlined_call_operand.vmem [shape: bf16[128,128], index: 3, kind: input, shape index: {}]
  %s4 = inlined_call_operand.hbm [shape: bf16[128,512], index: 4, kind: input, shape index: {}]
  %s5 = inlined_call_operand.hbm [shape: bf16[128,512], index: 5, kind: input, shape index: {}]
  %s6 = inlined_call_operand.vmem [shape: f32[1,512], index: 6, kind: input, shape index: {}]
  %s7 = inlined_call_operand.vmem [shape: f32[1,128], index: 7, kind: input, shape index: {}]
  %s8 = inlined_call_operand.<no memory space> [shape: f32[1,1], index: 8, kind: input, shape index: {}]
  %s9 = inlined_call_operand.vmem [shape: f32[8,1], index: 9, kind: output, shape index: {}]
  %s10 = sld [smem:[#allocation0]]
  $region62: #{tpu_custom_call.1} parent=0
    _
  %s12 = ssub.s32 1, %s10
  %s13 = scalar_select 0, %s12, %s10
  %14 = sst [smem:[#allocation6]] %s0
  %v15 = vstv %s8
  %16 = vst [vmem:[#allocation7] sm:$0x1] %v15
  $region1: #{tpu_custom_call.1} parent=0
    #allocation8 [shape = 'u8[131072]{0}', space=vmem, size = 0x20000, scoped, tag = 'input window, operand 4, single buffered']
    #allocation9 [shape = 's32[1]{0}', space=sflag, size = 0x4, scoped, tag = 'scoped memory for tpu_custom_call.1']
    #allocation10 [shape = 'u8[131072]{0}', space=vmem, size = 0x20000, scoped, tag = 'input window, operand 5, single buffered']
    #allocation11 [shape = 's32[1]{0}', space=sflag, size = 0x4, scoped, tag = 'scoped memory for tpu_custom_call.1']
    %17 = vsyncpa [#allocation9], 0
    %18 = vsyncpa [#allocation11], 0
    // Predicated region
    $region2: #{tpu_custom_call.1} parent=1 // pred_check
      _
    $region3: #{tpu_custom_call.1} parent=1 // pred_check_branch
      %20 = sbr.rel (0) target = $region5
    $region4: #{tpu_custom_call.1} parent=1 // pred_region
      _
    $region5: #{tpu_custom_call.1} parent=1 // pred_fallthru
      _
    // Predicated region
    $region6: #{tpu_custom_call.1} parent=1 // pred_check
      _
    $region7: #{tpu_custom_call.1} parent=1 // pred_check_branch
      %22 = sbr.rel (0) target = $region9
    $region8: #{tpu_custom_call.1} parent=1 // pred_region
      _
    $region9: #{tpu_custom_call.1} parent=1 // pred_fallthru
      _
    // Predicated region
    $region10: #{tpu_custom_call.1} parent=1 // pred_check
      _
    $region11: #{tpu_custom_call.1} parent=1 // pred_check_branch
      %24 = sbr.rel (0) target = $region13
    $region12: #{tpu_custom_call.1} parent=1 // pred_region
      _
    $region13: #{tpu_custom_call.1} parent=1 // pred_fallthru
      _
    // Predicated region
    $region14: #{tpu_custom_call.1} parent=1 // pred_check
      _
    $region15: #{tpu_custom_call.1} parent=1 // pred_check_branch
      %26 = sbr.rel (0) target = $region17
    $region16: #{tpu_custom_call.1} parent=1 // pred_region
      %28 = vsyncadd [#allocation9], 0
      %s29 = sshll.u32 %s4, 4
      %s30 = int_to_ptr.hbm [resolvable:$true] %s29
      %s31 = sshll.u32 [#allocation8], 4
      %s32 = int_to_ptr.vmem [resolvable:$true] %s31
      %37 = dma.hbm_to_vmem [thread:$0]  %s30, 4096, %s32, [#allocation9], 256, 256, 16
    $region17: #{tpu_custom_call.1} parent=1 // pred_fallthru
      _
    // Predicated region
    $region18: #{tpu_custom_call.1} parent=1 // pred_check
      _
    $region19: #{tpu_custom_call.1} parent=1 // pred_check_branch
      %39 = sbr.rel (0) target = $region21
    $region20: #{tpu_custom_call.1} parent=1 // pred_region
      %41 = vsyncadd [#allocation11], 0
      %s42 = sshll.u32 %s5, 4
      %s43 = int_to_ptr.hbm [resolvable:$true] %s42
      %s44 = sshll.u32 [#allocation10], 4
      %s45 = int_to_ptr.vmem [resolvable:$true] %s44
      %50 = dma.hbm_to_vmem [thread:$0]  %s43, 4096, %s45, [#allocation11], 256, 256, 16
    $region21: #{tpu_custom_call.1} parent=1 // pred_fallthru
      _
    // Predicated region
    $region22: #{tpu_custom_call.1} parent=1 // pred_check
      _
    $region23: #{tpu_custom_call.1} parent=1 // pred_check_branch
      %52 = sbr.rel (0) target = $region25
    $region24: #{tpu_custom_call.1} parent=1 // pred_region
      _
    $region25: #{tpu_custom_call.1} parent=1 // pred_fallthru
      _
    // Predicated region
    $region26: #{tpu_custom_call.1} parent=1 // pred_check
      _
    $region27: #{tpu_custom_call.1} parent=1 // pred_check_branch
      %54 = sbr.rel (0) target = $region29
    $region28: #{tpu_custom_call.1} parent=1 // pred_region
      _
    $region29: #{tpu_custom_call.1} parent=1 // pred_fallthru
      _
    // Predicated region
    $region30: #{tpu_custom_call.1} parent=1 // pred_check
      _
    $region31: #{tpu_custom_call.1} parent=1 // pred_check_branch
      %56 = sbr.rel (0) target = $region33
    $region32: #{tpu_custom_call.1} parent=1 // pred_region
      _
    $region33: #{tpu_custom_call.1} parent=1 // pred_fallthru
      _
    // Predicated region
    $region34: #{tpu_custom_call.1} parent=1 // pred_check
      _
    $region35: #{tpu_custom_call.1} parent=1 // pred_check_branch
      %58 = sbr.rel (0) target = $region37
    $region36: #{tpu_custom_call.1} parent=1 // pred_region
      %60 = dma.done [#allocation9], 4096
    $region37: #{tpu_custom_call.1} parent=1 // pred_fallthru
      _
    // Predicated region
    $region38: #{tpu_custom_call.1} parent=1 // pred_check
      _
    $region39: #{tpu_custom_call.1} parent=1 // pred_check_branch
      %62 = sbr.rel (0) target = $region41
    $region40: #{tpu_custom_call.1} parent=1 // pred_region
      %64 = dma.done [#allocation11], 4096
    $region41: #{tpu_custom_call.1} parent=1 // pred_fallthru
      _
    %s65 = smul.u32 0, 8
    %s66 = sld [smem:[#allocation6]]
    %p67 = scmp.eq.s32.totalorder 0, 0
    // Predicated region
    $region42: #{tpu_custom_call.1} parent=1 // pred_check
      %p68 = pneg %p67
    $region43: #{tpu_custom_call.1} parent=1 // pred_check_branch
      %70 = sbr.rel (%p68) target = $region45
    $region44: #{tpu_custom_call.1} parent=1 // pred_region
      %71 = vst [vmem:[#allocation3] sm:$0xff] 0.0
      %72 = vst [vmem:[#allocation4] sm:$0xff] 0.0
    $region45: #{tpu_custom_call.1} parent=1 // pred_fallthru
      _
    %p73 = scmp.lt.s32.totalorder %s65, %s66
    // Predicated region
    $region46: #{tpu_custom_call.1} parent=1 // pred_check
      %p74 = pneg %p73
    $region47: #{tpu_custom_call.1} parent=1 // pred_check_branch
      %76 = sbr.rel (%p74) target = $region49
    $region48: #{tpu_custom_call.1} parent=1 // pred_region
      %v77 = vld [vmem:[%s1] sm:$0xff]
      %v78 = vld [vmem:[%s1 + $0x8] sm:$0xff]
      %v79 = vld [vmem:[%s1 + $0x10] sm:$0xff]
      %v80 = vld [vmem:[%s1 + $0x18] sm:$0xff]
      %v81 = vld [vmem:[%s1 + $0x20] sm:$0xff]
      %v82 = vld [vmem:[%s1 + $0x28] sm:$0xff]
      %v83 = vld [vmem:[%s1 + $0x30] sm:$0xff]
      %v84 = vld [vmem:[%s1 + $0x38] sm:$0xff]
      %v85 = vlaneseq
      %v86 = vand.u32 %v85, 127
      %87 = vset.pattern.permute.xlu0 0
      %88 = vperm.xlu0 %87, %v77
      %v89 = vpop.permute.xlu0 %88
      %90 = vset.pattern.permute.xlu0 0
      %91 = vperm.xlu0 %90, %v78
      %v92 = vpop.permute.xlu0 %91
      %93 = vset.pattern.permute.xlu0 0
      %94 = vperm.xlu0 %93, %v79
      %v95 = vpop.permute.xlu0 %94
      %96 = vset.pattern.permute.xlu0 0
      %97 = vperm.xlu0 %96, %v80
      %v98 = vpop.permute.xlu0 %97
      %99 = vset.pattern.permute.xlu0 0
      %100 = vperm.xlu0 %99, %v81
      %v101 = vpop.permute.xlu0 %100
      %102 = vset.pattern.permute.xlu0 0
      %103 = vperm.xlu0 %102, %v82
      %v104 = vpop.permute.xlu0 %103
      %105 = vset.pattern.permute.xlu0 0
      %106 = vperm.xlu0 %105, %v83
      %v107 = vpop.permute.xlu0 %106
      %108 = vset.pattern.permute.xlu0 0
      %109 = vperm.xlu0 %108, %v84
      %v110 = vpop.permute.xlu0 %109
      %vm111 = vcmp.eq.s32.totalorder %v86, %v89
      %vm112 = vcmp.eq.s32.totalorder %v86, %v92
      %vm113 = vcmp.eq.s32.totalorder %v86, %v95
      %vm114 = vcmp.eq.s32.totalorder %v86, %v98
      %vm115 = vcmp.eq.s32.totalorder %v86, %v101
      %vm116 = vcmp.eq.s32.totalorder %v86, %v104
      %vm117 = vcmp.eq.s32.totalorder %v86, %v107
      %vm118 = vcmp.eq.s32.totalorder %v86, %v110
      %v119 = vsel %vm111, 1, 0
      %v120 = vsel %vm112, 1, 0
      %v121 = vsel %vm113, 1, 0
      %v122 = vsel %vm114, 1, 0
      %v123 = vsel %vm115, 1, 0
      %v124 = vsel %vm116, 1, 0
      %v125 = vsel %vm117, 1, 0
      %v126 = vsel %vm118, 1, 0
      %v127 = vcvt.s32.f32 %v119
      %v128 = vcvt.s32.f32 %v120
      %v129 = vcvt.s32.f32 %v121
      %v130 = vcvt.s32.f32 %v122
      %v131 = vcvt.s32.f32 %v123
      %v132 = vcvt.s32.f32 %v124
      %v133 = vcvt.s32.f32 %v125
      %v134 = vcvt.s32.f32 %v126
      %v135 = vpack.c.bf16 %v128, %v127
      %v136 = vpack.c.bf16 %v130, %v129
      %v137 = vpack.c.bf16 %v132, %v131
      %v138 = vpack.c.bf16 %v134, %v133
      %v139 = vld [vmem:[%s3] sm:$0xf]
      %v140 = vld [vmem:[%s3 + $0x4] sm:$0xf]
      %v141 = vld [vmem:[%s3 + $0x8] sm:$0xf]
      %v142 = vld [vmem:[%s3 + $0xc] sm:$0xf]
      %v143 = vld [vmem:[%s3 + $0x10] sm:$0xf]
      %v144 = vld [vmem:[%s3 + $0x14] sm:$0xf]
      %v145 = vld [vmem:[%s3 + $0x18] sm:$0xf]
      %v146 = vld [vmem:[%s3 + $0x1c] sm:$0xf]
      %v147 = vld [vmem:[%s3 + $0x20] sm:$0xf]
      %v148 = vld [vmem:[%s3 + $0x24] sm:$0xf]
      %v149 = vld [vmem:[%s3 + $0x28] sm:$0xf]
      %v150 = vld [vmem:[%s3 + $0x2c] sm:$0xf]
      %v151 = vld [vmem:[%s3 + $0x30] sm:$0xf]
      %v152 = vld [vmem:[%s3 + $0x34] sm:$0xf]
      %v153 = vld [vmem:[%s3 + $0x38] sm:$0xf]
      %v154 = vld [vmem:[%s3 + $0x3c] sm:$0xf]
      %v171 = vunpack.c.l.b16 %v139
      %v172 = vunpack.c.l.b16 %v140
      %v173 = vunpack.c.l.b16 %v141
      %v174 = vunpack.c.l.b16 %v142
      %v175 = vunpack.c.l.b16 %v143
      %v176 = vunpack.c.l.b16 %v144
      %v177 = vunpack.c.l.b16 %v145
      %v178 = vunpack.c.l.b16 %v146
      %v179 = vunpack.c.l.b16 %v147
      %v180 = vunpack.c.l.b16 %v148
      %v181 = vunpack.c.l.b16 %v149
      %v182 = vunpack.c.l.b16 %v150
      %v183 = vunpack.c.l.b16 %v151
      %v184 = vunpack.c.l.b16 %v152
      %v185 = vunpack.c.l.b16 %v153
      %v186 = vunpack.c.l.b16 %v154
      %v187 = vpack.c.b16 %v172, %v171
      %v188 = vpack.c.b16 %v174, %v173
      %v189 = vpack.c.b16 %v176, %v175
      %v190 = vpack.c.b16 %v178, %v177
      %v191 = vpack.c.b16 %v180, %v179
      %v192 = vpack.c.b16 %v182, %v181
      %v193 = vpack.c.b16 %v184, %v183
      %v194 = vpack.c.b16 %v186, %v185
      %203 = vmatpush.bf16.msra.mxu0 %v194
      %204 = vmatpush.bf16.msra.mxu0 %v193
      %205 = vmatpush.bf16.msra.mxu0 %v192
      %206 = vmatpush.bf16.msra.mxu0 %v191
      %207 = vmatpush.bf16.msra.mxu0 %v190
      %208 = vmatpush.bf16.msra.mxu0 %v189
      %209 = vmatpush.bf16.msra.mxu0 %v188
      %210 = vmatpush.bf16.msra.mxu0 %v187
      %211 = vmatmul.bf16.gmra.mxu0 %v135
      %v212 = vpop.f32.mrf.mxu0
      %v213 = vadd.f32 0.0, %v212
      %v214 = vpop.f32.mrf.mxu0
      %v215 = vadd.f32 0.0, %v214
      %216 = vmatmul.bf16.gmra.mxu0 %v136
      %v217 = vpop.f32.mrf.mxu0
      %v218 = vadd.f32 0.0, %v217
      %v219 = vpop.f32.mrf.mxu0
      %v220 = vadd.f32 0.0, %v219
      %221 = vmatmul.bf16.gmra.mxu0 %v137
      %v222 = vpop.f32.mrf.mxu0
      %v223 = vadd.f32 0.0, %v222
      %v224 = vpop.f32.mrf.mxu0
      %v225 = vadd.f32 0.0, %v224
      %226 = vmatmul.bf16.gmra.mxu0 %v138
      %v227 = vpop.f32.mrf.mxu0
      %v228 = vadd.f32 0.0, %v227
      %v229 = vpop.f32.mrf.mxu0
      %v230 = vadd.f32 0.0, %v229
      %231 = vdwg.mxu0
      %v232 = vpack.c.bf16 %v215, %v213
      %v233 = vpack.c.bf16 %v220, %v218
      %v234 = vpack.c.bf16 %v225, %v223
      %v235 = vpack.c.bf16 %v230, %v228
      %v236 = vld [vmem:[#allocation8] sm:$0xff]
      %v237 = vld [vmem:[#allocation8 + $0x8] sm:$0xff]
      %v238 = vld [vmem:[#allocation8 + $0x10] sm:$0xff]
      %v239 = vld [vmem:[#allocation8 + $0x18] sm:$0xff]
      %v240 = vld [vmem:[#allocation8 + $0x20] sm:$0xff]
      %v241 = vld [vmem:[#allocation8 + $0x28] sm:$0xff]
      %v242 = vld [vmem:[#allocation8 + $0x30] sm:$0xff]
      %v243 = vld [vmem:[#allocation8 + $0x38] sm:$0xff]
      %v244 = vld [vmem:[#allocation8 + $0x40] sm:$0xff]
      %v245 = vld [vmem:[#allocation8 + $0x48] sm:$0xff]
      %v246 = vld [vmem:[#allocation8 + $0x50] sm:$0xff]
      %v247 = vld [vmem:[#allocation8 + $0x58] sm:$0xff]
      %v248 = vld [vmem:[#allocation8 + $0x60] sm:$0xff]
      %v249 = vld [vmem:[#allocation8 + $0x68] sm:$0xff]
      %v250 = vld [vmem:[#allocation8 + $0x70] sm:$0xff]
      %v251 = vld [vmem:[#allocation8 + $0x78] sm:$0xff]
      %v252 = vld [vmem:[#allocation8 + $0x80] sm:$0xff]
      %v253 = vld [vmem:[#allocation8 + $0x88] sm:$0xff]
      %v254 = vld [vmem:[#allocation8 + $0x90] sm:$0xff]
      %v255 = vld [vmem:[#allocation8 + $0x98] sm:$0xff]
      %v256 = vld [vmem:[#allocation8 + $0xa0] sm:$0xff]
      %v257 = vld [vmem:[#allocation8 + $0xa8] sm:$0xff]
      %v258 = vld [vmem:[#allocation8 + $0xb0] sm:$0xff]
      %v259 = vld [vmem:[#allocation8 + $0xb8] sm:$0xff]
      %v260 = vld [vmem:[#allocation8 + $0xc0] sm:$0xff]
      %v261 = vld [vmem:[#allocation8 + $0xc8] sm:$0xff]
      %v262 = vld [vmem:[#allocation8 + $0xd0] sm:$0xff]
      %v263 = vld [vmem:[#allocation8 + $0xd8] sm:$0xff]
      %v264 = vld [vmem:[#allocation8 + $0xe0] sm:$0xff]
      %v265 = vld [vmem:[#allocation8 + $0xe8] sm:$0xff]
      %v266 = vld [vmem:[#allocation8 + $0xf0] sm:$0xff]
      %v267 = vld [vmem:[#allocation8 + $0xf8] sm:$0xff]
      %v268 = vld [vmem:[%s6] sm:$0xf]
      %v270 = vperm.slane %v268, 0
      %v271 = vperm.slane %v268, 1
      %v272 = vperm.slane %v268, 2
      %v273 = vperm.slane %v268, 3
      %v310 = vunpack.c.l.b16 %v236
      %v311 = vunpack.c.h.b16 %v236
      %v312 = vunpack.c.l.b16 %v237
      %v313 = vunpack.c.h.b16 %v237
      %v314 = vunpack.c.l.b16 %v238
      %v315 = vunpack.c.h.b16 %v238
      %v316 = vunpack.c.l.b16 %v239
      %v317 = vunpack.c.h.b16 %v239
      %v318 = vunpack.c.l.b16 %v240
      %v319 = vunpack.c.h.b16 %v240
      %v320 = vunpack.c.l.b16 %v241
      %v321 = vunpack.c.h.b16 %v241
      %v322 = vunpack.c.l.b16 %v242
      %v323 = vunpack.c.h.b16 %v242
      %v324 = vunpack.c.l.b16 %v243
      %v325 = vunpack.c.h.b16 %v243
      %v326 = vunpack.c.l.b16 %v244
      %v327 = vunpack.c.h.b16 %v244
      %v328 = vunpack.c.l.b16 %v245
      %v329 = vunpack.c.h.b16 %v245
      %v330 = vunpack.c.l.b16 %v246
      %v331 = vunpack.c.h.b16 %v246
      %v332 = vunpack.c.l.b16 %v247
      %v333 = vunpack.c.h.b16 %v247
      %v334 = vunpack.c.l.b16 %v248
      %v335 = vunpack.c.h.b16 %v248
      %v336 = vunpack.c.l.b16 %v249
      %v337 = vunpack.c.h.b16 %v249
      %v338 = vunpack.c.l.b16 %v250
      %v339 = vunpack.c.h.b16 %v250
      %v340 = vunpack.c.l.b16 %v251
      %v341 = vunpack.c.h.b16 %v251
      %v342 = vunpack.c.l.b16 %v252
      %v343 = vunpack.c.h.b16 %v252
      %v344 = vunpack.c.l.b16 %v253
      %v345 = vunpack.c.h.b16 %v253
      %v346 = vunpack.c.l.b16 %v254
      %v347 = vunpack.c.h.b16 %v254
      %v348 = vunpack.c.l.b16 %v255
      %v349 = vunpack.c.h.b16 %v255
      %v350 = vunpack.c.l.b16 %v256
      %v351 = vunpack.c.h.b16 %v256
      %v352 = vunpack.c.l.b16 %v257
      %v353 = vunpack.c.h.b16 %v257
      %v354 = vunpack.c.l.b16 %v258
      %v355 = vunpack.c.h.b16 %v258
      %v356 = vunpack.c.l.b16 %v259
      %v357 = vunpack.c.h.b16 %v259
      %v358 = vunpack.c.l.b16 %v260
      %v359 = vunpack.c.h.b16 %v260
      %v360 = vunpack.c.l.b16 %v261
      %v361 = vunpack.c.h.b16 %v261
      %v362 = vunpack.c.l.b16 %v262
      %v363 = vunpack.c.h.b16 %v262
      %v364 = vunpack.c.l.b16 %v263
      %v365 = vunpack.c.h.b16 %v263
      %v366 = vunpack.c.l.b16 %v264
      %v367 = vunpack.c.h.b16 %v264
      %v368 = vunpack.c.l.b16 %v265
      %v369 = vunpack.c.h.b16 %v265
      %v370 = vunpack.c.l.b16 %v266
      %v371 = vunpack.c.h.b16 %v266
      %v372 = vunpack.c.l.b16 %v267
      %v373 = vunpack.c.h.b16 %v267
      %v374 = vpack.c.b16 %v314, %v310
      %v375 = vpack.c.b16 %v315, %v311
      %v376 = vpack.c.b16 %v316, %v312
      %v377 = vpack.c.b16 %v317, %v313
      %v378 = vpack.c.b16 %v322, %v318
      %v379 = vpack.c.b16 %v323, %v319
      %v380 = vpack.c.b16 %v324, %v320
      %v381 = vpack.c.b16 %v325, %v321
      %v382 = vpack.c.b16 %v330, %v326
      %v383 = vpack.c.b16 %v331, %v327
      %v384 = vpack.c.b16 %v332, %v328
      %v385 = vpack.c.b16 %v333, %v329
      %v386 = vpack.c.b16 %v338, %v334
      %v387 = vpack.c.b16 %v339, %v335
      %v388 = vpack.c.b16 %v340, %v336
      %v389 = vpack.c.b16 %v341, %v337
      %v390 = vpack.c.b16 %v346, %v342
      %v391 = vpack.c.b16 %v347, %v343
      %v392 = vpack.c.b16 %v348, %v344
      %v393 = vpack.c.b16 %v349, %v345
      %v394 = vpack.c.b16 %v354, %v350
      %v395 = vpack.c.b16 %v355, %v351
      %v396 = vpack.c.b16 %v356, %v352
      %v397 = vpack.c.b16 %v357, %v353
      %v398 = vpack.c.b16 %v362, %v358
      %v399 = vpack.c.b16 %v363, %v359
      %v400 = vpack.c.b16 %v364, %v360
      %v401 = vpack.c.b16 %v365, %v361
      %v402 = vpack.c.b16 %v370, %v366
      %v403 = vpack.c.b16 %v371, %v367
      %v404 = vpack.c.b16 %v372, %v368
      %v405 = vpack.c.b16 %v373, %v369
      %438 = vmatpush.bf16.msra.mxu0 %v402
      %439 = vmatpush.bf16.msra.mxu0 %v398
      %440 = vmatpush.bf16.msra.mxu0 %v394
      %441 = vmatpush.bf16.msra.mxu0 %v390
      %442 = vmatpush.bf16.msra.mxu0 %v386
      %443 = vmatpush.bf16.msra.mxu0 %v382
      %444 = vmatpush.bf16.msra.mxu0 %v378
      %445 = vmatpush.bf16.msra.mxu0 %v374
      %446 = vmatmul.bf16.gmra.mxu0 %v232
      %v447 = vpop.f32.mrf.mxu0
      %v448 = vadd.f32 %v270, %v447
      %v449 = vpop.f32.mrf.mxu0
      %v450 = vadd.f32 %v270, %v449
      %451 = vmatmul.bf16.gmra.mxu0 %v233
      %v452 = vpop.f32.mrf.mxu0
      %v453 = vadd.f32 %v270, %v452
      %v454 = vpop.f32.mrf.mxu0
      %v455 = vadd.f32 %v270, %v454
      %456 = vmatmul.bf16.gmra.mxu0 %v234
      %v457 = vpop.f32.mrf.mxu0
      %v458 = vadd.f32 %v270, %v457
      %v459 = vpop.f32.mrf.mxu0
      %v460 = vadd.f32 %v270, %v459
      %461 = vmatmul.bf16.gmra.mxu0 %v235
      %v462 = vpop.f32.mrf.mxu0
      %v463 = vadd.f32 %v270, %v462
      %v464 = vpop.f32.mrf.mxu0
      %v465 = vadd.f32 %v270, %v464
      %466 = vdwg.mxu0
      %467 = vmatpush.bf16.msra.mxu0 %v403
      %468 = vmatpush.bf16.msra.mxu0 %v399
      %469 = vmatpush.bf16.msra.mxu0 %v395
      %470 = vmatpush.bf16.msra.mxu0 %v391
      %471 = vmatpush.bf16.msra.mxu0 %v387
      %472 = vmatpush.bf16.msra.mxu0 %v383
      %473 = vmatpush.bf16.msra.mxu0 %v379
      %474 = vmatpush.bf16.msra.mxu0 %v375
      %475 = vmatmul.bf16.gmra.mxu0 %v232
      %v476 = vpop.f32.mrf.mxu0
      %v477 = vadd.f32 %v271, %v476
      %v478 = vpop.f32.mrf.mxu0
      %v479 = vadd.f32 %v271, %v478
      %480 = vmatmul.bf16.gmra.mxu0 %v233
      %v481 = vpop.f32.mrf.mxu0
      %v482 = vadd.f32 %v271, %v481
      %v483 = vpop.f32.mrf.mxu0
      %v484 = vadd.f32 %v271, %v483
      %485 = vmatmul.bf16.gmra.mxu0 %v234
      %v486 = vpop.f32.mrf.mxu0
      %v487 = vadd.f32 %v271, %v486
      %v488 = vpop.f32.mrf.mxu0
      %v489 = vadd.f32 %v271, %v488
      %490 = vmatmul.bf16.gmra.mxu0 %v235
      %v491 = vpop.f32.mrf.mxu0
      %v492 = vadd.f32 %v271, %v491
      %v493 = vpop.f32.mrf.mxu0
      %v494 = vadd.f32 %v271, %v493
      %495 = vdwg.mxu0
      %496 = vmatpush.bf16.msra.mxu0 %v404
      %497 = vmatpush.bf16.msra.mxu0 %v400
      %498 = vmatpush.bf16.msra.mxu0 %v396
      %499 = vmatpush.bf16.msra.mxu0 %v392
      %500 = vmatpush.bf16.msra.mxu0 %v388
      %501 = vmatpush.bf16.msra.mxu0 %v384
      %502 = vmatpush.bf16.msra.mxu0 %v380
      %503 = vmatpush.bf16.msra.mxu0 %v376
      %504 = vmatmul.bf16.gmra.mxu0 %v232
      %v505 = vpop.f32.mrf.mxu0
      %v506 = vadd.f32 %v272, %v505
      %v507 = vpop.f32.mrf.mxu0
      %v508 = vadd.f32 %v272, %v507
      %509 = vmatmul.bf16.gmra.mxu0 %v233
      %v510 = vpop.f32.mrf.mxu0
      %v511 = vadd.f32 %v272, %v510
      %v512 = vpop.f32.mrf.mxu0
      %v513 = vadd.f32 %v272, %v512
      %514 = vmatmul.bf16.gmra.mxu0 %v234
      %v515 = vpop.f32.mrf.mxu0
      %v516 = vadd.f32 %v272, %v515
      %v517 = vpop.f32.mrf.mxu0
      %v518 = vadd.f32 %v272, %v517
      %519 = vmatmul.bf16.gmra.mxu0 %v235
      %v520 = vpop.f32.mrf.mxu0
      %v521 = vadd.f32 %v272, %v520
      %v522 = vpop.f32.mrf.mxu0
      %v523 = vadd.f32 %v272, %v522
      %524 = vdwg.mxu0
      %525 = vmatpush.bf16.msra.mxu0 %v405
      %526 = vmatpush.bf16.msra.mxu0 %v401
      %527 = vmatpush.bf16.msra.mxu0 %v397
      %528 = vmatpush.bf16.msra.mxu0 %v393
      %529 = vmatpush.bf16.msra.mxu0 %v389
      %530 = vmatpush.bf16.msra.mxu0 %v385
      %531 = vmatpush.bf16.msra.mxu0 %v381
      %532 = vmatpush.bf16.msra.mxu0 %v377
      %533 = vmatmul.bf16.gmra.mxu0 %v232
      %v534 = vpop.f32.mrf.mxu0
      %v535 = vadd.f32 %v273, %v534
      %v536 = vpop.f32.mrf.mxu0
      %v537 = vadd.f32 %v273, %v536
      %538 = vmatmul.bf16.gmra.mxu0 %v233
      %v539 = vpop.f32.mrf.mxu0
      %v540 = vadd.f32 %v273, %v539
      %v541 = vpop.f32.mrf.mxu0
      %v542 = vadd.f32 %v273, %v541
      %543 = vmatmul.bf16.gmra.mxu0 %v234
      %v544 = vpop.f32.mrf.mxu0
      %v545 = vadd.f32 %v273, %v544
      %v546 = vpop.f32.mrf.mxu0
      %v547 = vadd.f32 %v273, %v546
      %548 = vmatmul.bf16.gmra.mxu0 %v235
      %v549 = vpop.f32.mrf.mxu0
      %v550 = vadd.f32 %v273, %v549
      %v551 = vpop.f32.mrf.mxu0
      %v552 = vadd.f32 %v273, %v551
      %553 = vdwg.mxu0
      %554 = vst [vmem:[#allocation2] sm:$0xff] %v448
      %555 = vst [vmem:[#allocation2 + $0x8] sm:$0xff] %v477
      %556 = vst [vmem:[#allocation2 + $0x10] sm:$0xff] %v506
      %557 = vst [vmem:[#allocation2 + $0x18] sm:$0xff] %v535
      %558 = vst [vmem:[#allocation2 + $0x20] sm:$0xff] %v450
      %559 = vst [vmem:[#allocation2 + $0x28] sm:$0xff] %v479
      %560 = vst [vmem:[#allocation2 + $0x30] sm:$0xff] %v508
      %561 = vst [vmem:[#allocation2 + $0x38] sm:$0xff] %v537
      %562 = vst [vmem:[#allocation2 + $0x40] sm:$0xff] %v453
      %563 = vst [vmem:[#allocation2 + $0x48] sm:$0xff] %v482
      %564 = vst [vmem:[#allocation2 + $0x50] sm:$0xff] %v511
      %565 = vst [vmem:[#allocation2 + $0x58] sm:$0xff] %v540
      %566 = vst [vmem:[#allocation2 + $0x60] sm:$0xff] %v455
      %567 = vst [vmem:[#allocation2 + $0x68] sm:$0xff] %v484
      %568 = vst [vmem:[#allocation2 + $0x70] sm:$0xff] %v513
      %569 = vst [vmem:[#allocation2 + $0x78] sm:$0xff] %v542
      %570 = vst [vmem:[#allocation2 + $0x80] sm:$0xff] %v458
      %571 = vst [vmem:[#allocation2 + $0x88] sm:$0xff] %v487
      %572 = vst [vmem:[#allocation2 + $0x90] sm:$0xff] %v516
      %573 = vst [vmem:[#allocation2 + $0x98] sm:$0xff] %v545
      %574 = vst [vmem:[#allocation2 + $0xa0] sm:$0xff] %v460
      %575 = vst [vmem:[#allocation2 + $0xa8] sm:$0xff] %v489
      %576 = vst [vmem:[#allocation2 + $0xb0] sm:$0xff] %v518
      %577 = vst [vmem:[#allocation2 + $0xb8] sm:$0xff] %v547
      %578 = vst [vmem:[#allocation2 + $0xc0] sm:$0xff] %v463
      %579 = vst [vmem:[#allocation2 + $0xc8] sm:$0xff] %v492
      %580 = vst [vmem:[#allocation2 + $0xd0] sm:$0xff] %v521
      %581 = vst [vmem:[#allocation2 + $0xd8] sm:$0xff] %v550
      %582 = vst [vmem:[#allocation2 + $0xe0] sm:$0xff] %v465
      %583 = vst [vmem:[#allocation2 + $0xe8] sm:$0xff] %v494
      %584 = vst [vmem:[#allocation2 + $0xf0] sm:$0xff] %v523
      %585 = vst [vmem:[#allocation2 + $0xf8] sm:$0xff] %v552
      %v586 = vld [vmem:[#allocation10] sm:$0xff]
      %v587 = vld [vmem:[#allocation10 + $0x8] sm:$0xff]
      %v588 = vld [vmem:[#allocation10 + $0x10] sm:$0xff]
      %v589 = vld [vmem:[#allocation10 + $0x18] sm:$0xff]
      %v590 = vld [vmem:[#allocation10 + $0x20] sm:$0xff]
      %v591 = vld [vmem:[#allocation10 + $0x28] sm:$0xff]
      %v592 = vld [vmem:[#allocation10 + $0x30] sm:$0xff]
      %v593 = vld [vmem:[#allocation10 + $0x38] sm:$0xff]
      %v594 = vld [vmem:[#allocation10 + $0x40] sm:$0xff]
      %v595 = vld [vmem:[#allocation10 + $0x48] sm:$0xff]
      %v596 = vld [vmem:[#allocation10 + $0x50] sm:$0xff]
      %v597 = vld [vmem:[#allocation10 + $0x58] sm:$0xff]
      %v598 = vld [vmem:[#allocation10 + $0x60] sm:$0xff]
      %v599 = vld [vmem:[#allocation10 + $0x68] sm:$0xff]
      %v600 = vld [vmem:[#allocation10 + $0x70] sm:$0xff]
      %v601 = vld [vmem:[#allocation10 + $0x78] sm:$0xff]
      %v602 = vld [vmem:[#allocation10 + $0x80] sm:$0xff]
      %v603 = vld [vmem:[#allocation10 + $0x88] sm:$0xff]
      %v604 = vld [vmem:[#allocation10 + $0x90] sm:$0xff]
      %v605 = vld [vmem:[#allocation10 + $0x98] sm:$0xff]
      %v606 = vld [vmem:[#allocation10 + $0xa0] sm:$0xff]
      %v607 = vld [vmem:[#allocation10 + $0xa8] sm:$0xff]
      %v608 = vld [vmem:[#allocation10 + $0xb0] sm:$0xff]
      %v609 = vld [vmem:[#allocation10 + $0xb8] sm:$0xff]
      %v610 = vld [vmem:[#allocation10 + $0xc0] sm:$0xff]
      %v611 = vld [vmem:[#allocation10 + $0xc8] sm:$0xff]
      %v612 = vld [vmem:[#allocation10 + $0xd0] sm:$0xff]
      %v613 = vld [vmem:[#allocation10 + $0xd8] sm:$0xff]
      %v614 = vld [vmem:[#allocation10 + $0xe0] sm:$0xff]
      %v615 = vld [vmem:[#allocation10 + $0xe8] sm:$0xff]
      %v616 = vld [vmem:[#allocation10 + $0xf0] sm:$0xff]
      %v617 = vld [vmem:[#allocation10 + $0xf8] sm:$0xff]
      %v618 = vld [vmem:[%s2] sm:$0xff]
      %v619 = vld [vmem:[#allocation3] sm:$0xff]
      %v620 = vld [vmem:[#allocation4] sm:$0xff]
      %s621 = smul.u32 0, 4
      %s622 = smul.addr %s621, 8
      %s623 = scalar_lea.vmem [#allocation2], %s622
      %v624 = vld [vmem:[%s623] sm:$0xff]
      %v625 = vld [vmem:[%s623 + $0x8] sm:$0xff]
      %v626 = vld [vmem:[%s623 + $0x10] sm:$0xff]
      %v627 = vld [vmem:[%s623 + $0x18] sm:$0xff]
      %v628 = vpack.c.bf16 %v619, %v619
      %v661 = vunpack.c.l.b16 %v586
      %v662 = vunpack.c.h.b16 %v586
      %v663 = vunpack.c.l.b16 %v587
      %v664 = vunpack.c.h.b16 %v587
      %v665 = vunpack.c.l.b16 %v588
      %v666 = vunpack.c.h.b16 %v588
      %v667 = vunpack.c.l.b16 %v589
      %v668 = vunpack.c.h.b16 %v589
      %v669 = vunpack.c.l.b16 %v590
      %v670 = vunpack.c.h.b16 %v590
      %v671 = vunpack.c.l.b16 %v591
      %v672 = vunpack.c.h.b16 %v591
      %v673 = vunpack.c.l.b16 %v592
      %v674 = vunpack.c.h.b16 %v592
      %v675 = vunpack.c.l.b16 %v593
      %v676 = vunpack.c.h.b16 %v593
      %v677 = vunpack.c.l.b16 %v594
      %v678 = vunpack.c.h.b16 %v594
      %v679 = vunpack.c.l.b16 %v595
      %v680 = vunpack.c.h.b16 %v595
      %v681 = vunpack.c.l.b16 %v596
      %v682 = vunpack.c.h.b16 %v596
      %v683 = vunpack.c.l.b16 %v597
      %v684 = vunpack.c.h.b16 %v597
      %v685 = vunpack.c.l.b16 %v598
      %v686 = vunpack.c.h.b16 %v598
      %v687 = vunpack.c.l.b16 %v599
      %v688 = vunpack.c.h.b16 %v599
      %v689 = vunpack.c.l.b16 %v600
      %v690 = vunpack.c.h.b16 %v600
      %v691 = vunpack.c.l.b16 %v601
      %v692 = vunpack.c.h.b16 %v601
      %v693 = vunpack.c.l.b16 %v602
      %v694 = vunpack.c.h.b16 %v602
      %v695 = vunpack.c.l.b16 %v603
      %v696 = vunpack.c.h.b16 %v603
      %v697 = vunpack.c.l.b16 %v604
      %v698 = vunpack.c.h.b16 %v604
      %v699 = vunpack.c.l.b16 %v605
      %v700 = vunpack.c.h.b16 %v605
      %v701 = vunpack.c.l.b16 %v606
      %v702 = vunpack.c.h.b16 %v606
      %v703 = vunpack.c.l.b16 %v607
      %v704 = vunpack.c.h.b16 %v607
      %v705 = vunpack.c.l.b16 %v608
      %v706 = vunpack.c.h.b16 %v608
      %v707 = vunpack.c.l.b16 %v609
      %v708 = vunpack.c.h.b16 %v609
      %v709 = vunpack.c.l.b16 %v610
      %v710 = vunpack.c.h.b16 %v610
      %v711 = vunpack.c.l.b16 %v611
      %v712 = vunpack.c.h.b16 %v611
      %v713 = vunpack.c.l.b16 %v612
      %v714 = vunpack.c.h.b16 %v612
      %v715 = vunpack.c.l.b16 %v613
      %v716 = vunpack.c.h.b16 %v613
      %v717 = vunpack.c.l.b16 %v614
      %v718 = vunpack.c.h.b16 %v614
      %v719 = vunpack.c.l.b16 %v615
      %v720 = vunpack.c.h.b16 %v615
      %v721 = vunpack.c.l.b16 %v616
      %v722 = vunpack.c.h.b16 %v616
      %v723 = vunpack.c.l.b16 %v617
      %v724 = vunpack.c.h.b16 %v617
      %v725 = vpack.c.b16 %v665, %v661
      %v726 = vpack.c.b16 %v666, %v662
      %v727 = vpack.c.b16 %v667, %v663
      %v728 = vpack.c.b16 %v668, %v664
      %v729 = vpack.c.b16 %v673, %v669
      %v730 = vpack.c.b16 %v674, %v670
      %v731 = vpack.c.b16 %v675, %v671
      %v732 = vpack.c.b16 %v676, %v672
      %v733 = vpack.c.b16 %v681, %v677
      %v734 = vpack.c.b16 %v682, %v678
      %v735 = vpack.c.b16 %v683, %v679
      %v736 = vpack.c.b16 %v684, %v680
      %v737 = vpack.c.b16 %v689, %v685
      %v738 = vpack.c.b16 %v690, %v686
      %v739 = vpack.c.b16 %v691, %v687
      %v740 = vpack.c.b16 %v692, %v688
      %v741 = vpack.c.b16 %v697, %v693
      %v742 = vpack.c.b16 %v698, %v694
      %v743 = vpack.c.b16 %v699, %v695
      %v744 = vpack.c.b16 %v700, %v696
      %v745 = vpack.c.b16 %v705, %v701
      %v746 = vpack.c.b16 %v706, %v702
      %v747 = vpack.c.b16 %v707, %v703
      %v748 = vpack.c.b16 %v708, %v704
      %v749 = vpack.c.b16 %v713, %v709
      %v750 = vpack.c.b16 %v714, %v710
      %v751 = vpack.c.b16 %v715, %v711
      %v752 = vpack.c.b16 %v716, %v712
      %v753 = vpack.c.b16 %v721, %v717
      %v754 = vpack.c.b16 %v722, %v718
      %v755 = vpack.c.b16 %v723, %v719
      %v756 = vpack.c.b16 %v724, %v720
      %789 = vmatpush.bf16.msra.mxu0 %v753
      %790 = vmatpush.bf16.msra.mxu0 %v749
      %791 = vmatpush.bf16.msra.mxu0 %v745
      %792 = vmatpush.bf16.msra.mxu0 %v741
      %793 = vmatpush.bf16.msra.mxu0 %v737
      %794 = vmatpush.bf16.msra.mxu0 %v733
      %795 = vmatpush.bf16.msra.mxu0 %v729
      %796 = vmatpush.bf16.msra.mxu0 %v725
      %797 = vmatmul.bf16.gmra.mxu0 %v628
      %v798 = vpop.f32.mrf.mxu0
      %v799 = vadd.f32 0.0, %v798
      %v800 = vpop.f32.mrf.mxu0
      %801 = vdwg.mxu0
      %802 = vmatpush.bf16.msra.mxu0 %v754
      %803 = vmatpush.bf16.msra.mxu0 %v750
      %804 = vmatpush.bf16.msra.mxu0 %v746
      %805 = vmatpush.bf16.msra.mxu0 %v742
      %806 = vmatpush.bf16.msra.mxu0 %v738
      %807 = vmatpush.bf16.msra.mxu0 %v734
      %808 = vmatpush.bf16.msra.mxu0 %v730
      %809 = vmatpush.bf16.msra.mxu0 %v726
      %810 = vmatmul.bf16.gmra.mxu0 %v628
      %v811 = vpop.f32.mrf.mxu0
      %v812 = vadd.f32 0.0, %v811
      %v813 = vpop.f32.mrf.mxu0
      %814 = vdwg.mxu0
      %815 = vmatpush.bf16.msra.mxu0 %v755
      %816 = vmatpush.bf16.msra.mxu0 %v751
      %817 = vmatpush.bf16.msra.mxu0 %v747
      %818 = vmatpush.bf16.msra.mxu0 %v743
      %819 = vmatpush.bf16.msra.mxu0 %v739
      %820 = vmatpush.bf16.msra.mxu0 %v735
      %821 = vmatpush.bf16.msra.mxu0 %v731
      %822 = vmatpush.bf16.msra.mxu0 %v727
      %823 = vmatmul.bf16.gmra.mxu0 %v628
      %v824 = vpop.f32.mrf.mxu0
      %v825 = vadd.f32 0.0, %v824
      %v826 = vpop.f32.mrf.mxu0
      %827 = vdwg.mxu0
      %828 = vmatpush.bf16.msra.mxu0 %v756
      %829 = vmatpush.bf16.msra.mxu0 %v752
      %830 = vmatpush.bf16.msra.mxu0 %v748
      %831 = vmatpush.bf16.msra.mxu0 %v744
      %832 = vmatpush.bf16.msra.mxu0 %v740
      %833 = vmatpush.bf16.msra.mxu0 %v736
      %834 = vmatpush.bf16.msra.mxu0 %v732
      %835 = vmatpush.bf16.msra.mxu0 %v728
      %836 = vmatmul.bf16.gmra.mxu0 %v628
      %v837 = vpop.f32.mrf.mxu0
      %v838 = vadd.f32 0.0, %v837
      %v839 = vpop.f32.mrf.mxu0
      %840 = vdwg.mxu0
      %v841 = vadd.f32 %v624, %v799
      %v842 = vadd.f32 %v625, %v812
      %v843 = vadd.f32 %v626, %v825
      %v844 = vadd.f32 %v627, %v838
      %v845 = vxor.u32 %v841, 2147483648
      %v846 = vmul.f32 %v845, 1.442695
      %v847 = vpow.pop %v846
      %v848 = vadd.f32 %v847, 1.0
      %v849 = vrcp.pop %v848
      %v850 = vmul.f32 %v848, %v849
      %v851 = vsub.f32 1.0, %v850
      %v852 = vmul.f32 %v849, %v851
      %v853 = vadd.f32 %v849, %v852
      %vm854 = vweird.f32 %v848
      %vm855 = vweird.f32 %v849
      %vm856 = vmor %vm854, %vm855
      %v857 = vsel %vm856, %v849, %v853
      %v858 = vand.u32 2147483647, %v848
      %vm859 = vcmp.eq.f32.partialorder %v858, 8.507059e+37
      %v860 = vand.u32 %v848, 2147483648
      %v861 = vor.u32 1.1754944e-38, %v860
      %v862 = vsel %vm859, %v861, %v857
      %v863 = vmul.f32 1.0, %v862
      %v864 = vxor.u32 %v842, 2147483648
      %v865 = vmul.f32 %v864, 1.442695
      %v866 = vpow.pop %v865
      %v867 = vadd.f32 %v866, 1.0
      %v868 = vrcp.pop %v867
      %v869 = vmul.f32 %v867, %v868
      %v870 = vsub.f32 1.0, %v869
      %v871 = vmul.f32 %v868, %v870
      %v872 = vadd.f32 %v868, %v871
      %vm873 = vweird.f32 %v867
      %vm874 = vweird.f32 %v868
      %vm875 = vmor %vm873, %vm874
      %v876 = vsel %vm875, %v868, %v872
      %v877 = vand.u32 2147483647, %v867
      %vm878 = vcmp.eq.f32.partialorder %v877, 8.507059e+37
      %v879 = vand.u32 %v867, 2147483648
      %v880 = vor.u32 1.1754944e-38, %v879
      %v881 = vsel %vm878, %v880, %v876
      %v882 = vmul.f32 1.0, %v881
      %v883 = vtanh.pop %v843
      %v884 = vxor.u32 %v844, 2147483648
      %v885 = vmul.f32 %v884, 1.442695
      %v886 = vpow.pop %v885
      %v887 = vadd.f32 %v886, 1.0
      %v888 = vrcp.pop %v887
      %v889 = vmul.f32 %v887, %v888
      %v890 = vsub.f32 1.0, %v889
      %v891 = vmul.f32 %v888, %v890
      %v892 = vadd.f32 %v888, %v891
      %vm893 = vweird.f32 %v887
      %vm894 = vweird.f32 %v888
      %vm895 = vmor %vm893, %vm894
      %v896 = vsel %vm895, %v888, %v892
      %v897 = vand.u32 2147483647, %v887
      %vm898 = vcmp.eq.f32.partialorder %v897, 8.507059e+37
      %v899 = vand.u32 %v887, 2147483648
      %v900 = vor.u32 1.1754944e-38, %v899
      %v901 = vsel %vm898, %v900, %v896
      %v902 = vmul.f32 1.0, %v901
      %v903 = vmul.f32 %v882, %v620
      %v904 = vmul.f32 %v863, %v883
      %v905 = vadd.f32 %v903, %v904
      %v906 = vtanh.pop %v905
      %v907 = vmul.f32 %v902, %v906
      %v908 = vstv %s65
      %vm909 = vcmp.gt.s32.totalorder %v618, %v908
      %v910 = vsel %vm909, 1, 0
      %911 = vset.pattern.permute.xlu0 0
      %912 = vperm.xlu0 %911, %v910
      %v913 = vpop.permute.xlu0 %912
      %vm914 = vcmp.eq.s32.totalorder %v913, 1
      %v915 = vsel %vm914, %v907, %v619
      %v916 = vsel %vm914, %v905, %v620
      %s917 = smul.u32 1, 4
      %s918 = smul.addr %s917, 8
      %s919 = scalar_lea.vmem [#allocation2], %s918
      %v920 = vld [vmem:[%s919] sm:$0xff]
      %v921 = vld [vmem:[%s919 + $0x8] sm:$0xff]
      %v922 = vld [vmem:[%s919 + $0x10] sm:$0xff]
      %v923 = vld [vmem:[%s919 + $0x18] sm:$0xff]
      %v924 = vpack.c.bf16 %v915, %v915
      %925 = vmatpush.bf16.msra.mxu0 %v753
      %926 = vmatpush.bf16.msra.mxu0 %v749
      %927 = vmatpush.bf16.msra.mxu0 %v745
      %928 = vmatpush.bf16.msra.mxu0 %v741
      %929 = vmatpush.bf16.msra.mxu0 %v737
      %930 = vmatpush.bf16.msra.mxu0 %v733
      %931 = vmatpush.bf16.msra.mxu0 %v729
      %932 = vmatpush.bf16.msra.mxu0 %v725
      %933 = vmatmul.bf16.gmra.mxu0 %v924
      %v934 = vpop.f32.mrf.mxu0
      %v935 = vadd.f32 0.0, %v934
      %v936 = vpop.f32.mrf.mxu0
      %937 = vdwg.mxu0
      %938 = vmatpush.bf16.msra.mxu0 %v754
      %939 = vmatpush.bf16.msra.mxu0 %v750
      %940 = vmatpush.bf16.msra.mxu0 %v746
      %941 = vmatpush.bf16.msra.mxu0 %v742
      %942 = vmatpush.bf16.msra.mxu0 %v738
      %943 = vmatpush.bf16.msra.mxu0 %v734
      %944 = vmatpush.bf16.msra.mxu0 %v730
      %945 = vmatpush.bf16.msra.mxu0 %v726
      %946 = vmatmul.bf16.gmra.mxu0 %v924
      %v947 = vpop.f32.mrf.mxu0
      %v948 = vadd.f32 0.0, %v947
      %v949 = vpop.f32.mrf.mxu0
      %950 = vdwg.mxu0
      %951 = vmatpush.bf16.msra.mxu0 %v755
      %952 = vmatpush.bf16.msra.mxu0 %v751
      %953 = vmatpush.bf16.msra.mxu0 %v747
      %954 = vmatpush.bf16.msra.mxu0 %v743
      %955 = vmatpush.bf16.msra.mxu0 %v739
      %956 = vmatpush.bf16.msra.mxu0 %v735
      %957 = vmatpush.bf16.msra.mxu0 %v731
      %958 = vmatpush.bf16.msra.mxu0 %v727
      %959 = vmatmul.bf16.gmra.mxu0 %v924
      %v960 = vpop.f32.mrf.mxu0
      %v961 = vadd.f32 0.0, %v960
      %v962 = vpop.f32.mrf.mxu0
      %963 = vdwg.mxu0
      %964 = vmatpush.bf16.msra.mxu0 %v756
      %965 = vmatpush.bf16.msra.mxu0 %v752
      %966 = vmatpush.bf16.msra.mxu0 %v748
      %967 = vmatpush.bf16.msra.mxu0 %v744
      %968 = vmatpush.bf16.msra.mxu0 %v740
      %969 = vmatpush.bf16.msra.mxu0 %v736
      %970 = vmatpush.bf16.msra.mxu0 %v732
      %971 = vmatpush.bf16.msra.mxu0 %v728
      %972 = vmatmul.bf16.gmra.mxu0 %v924
      %v973 = vpop.f32.mrf.mxu0
      %v974 = vadd.f32 0.0, %v973
      %v975 = vpop.f32.mrf.mxu0
      %976 = vdwg.mxu0
      %v977 = vadd.f32 %v920, %v935
      %v978 = vadd.f32 %v921, %v948
      %v979 = vadd.f32 %v922, %v961
      %v980 = vadd.f32 %v923, %v974
      %v981 = vxor.u32 %v977, 2147483648
      %v982 = vmul.f32 %v981, 1.442695
      %v983 = vpow.pop %v982
      %v984 = vadd.f32 %v983, 1.0
      %v985 = vrcp.pop %v984
      %v986 = vmul.f32 %v984, %v985
      %v987 = vsub.f32 1.0, %v986
      %v988 = vmul.f32 %v985, %v987
      %v989 = vadd.f32 %v985, %v988
      %vm990 = vweird.f32 %v984
      %vm991 = vweird.f32 %v985
      %vm992 = vmor %vm990, %vm991
      %v993 = vsel %vm992, %v985, %v989
      %v994 = vand.u32 2147483647, %v984
      %vm995 = vcmp.eq.f32.partialorder %v994, 8.507059e+37
      %v996 = vand.u32 %v984, 2147483648
      %v997 = vor.u32 1.1754944e-38, %v996
      %v998 = vsel %vm995, %v997, %v993
      %v999 = vmul.f32 1.0, %v998
      %v1000 = vxor.u32 %v978, 2147483648
      %v1001 = vmul.f32 %v1000, 1.442695
      %v1002 = vpow.pop %v1001
      %v1003 = vadd.f32 %v1002, 1.0
      %v1004 = vrcp.pop %v1003
      %v1005 = vmul.f32 %v1003, %v1004
      %v1006 = vsub.f32 1.0, %v1005
      %v1007 = vmul.f32 %v1004, %v1006
      %v1008 = vadd.f32 %v1004, %v1007
      %vm1009 = vweird.f32 %v1003
      %vm1010 = vweird.f32 %v1004
      %vm1011 = vmor %vm1009, %vm1010
      %v1012 = vsel %vm1011, %v1004, %v1008
      %v1013 = vand.u32 2147483647, %v1003
      %vm1014 = vcmp.eq.f32.partialorder %v1013, 8.507059e+37
      %v1015 = vand.u32 %v1003, 2147483648
      %v1016 = vor.u32 1.1754944e-38, %v1015
      %v1017 = vsel %vm1014, %v1016, %v1012
      %v1018 = vmul.f32 1.0, %v1017
      %v1019 = vtanh.pop %v979
      %v1020 = vxor.u32 %v980, 2147483648
      %v1021 = vmul.f32 %v1020, 1.442695
      %v1022 = vpow.pop %v1021
      %v1023 = vadd.f32 %v1022, 1.0
      %v1024 = vrcp.pop %v1023
      %v1025 = vmul.f32 %v1023, %v1024
      %v1026 = vsub.f32 1.0, %v1025
      %v1027 = vmul.f32 %v1024, %v1026
      %v1028 = vadd.f32 %v1024, %v1027
      %vm1029 = vweird.f32 %v1023
      %vm1030 = vweird.f32 %v1024
      %vm1031 = vmor %vm1029, %vm1030
      %v1032 = vsel %vm1031, %v1024, %v1028
      %v1033 = vand.u32 2147483647, %v1023
      %vm1034 = vcmp.eq.f32.partialorder %v1033, 8.507059e+37
      %v1035 = vand.u32 %v1023, 2147483648
      %v1036 = vor.u32 1.1754944e-38, %v1035
      %v1037 = vsel %vm1034, %v1036, %v1032
      %v1038 = vmul.f32 1.0, %v1037
      %v1039 = vmul.f32 %v1018, %v916
      %v1040 = vmul.f32 %v999, %v1019
      %v1041 = vadd.f32 %v1039, %v1040
      %v1042 = vtanh.pop %v1041
      %v1043 = vmul.f32 %v1038, %v1042
      %s1044 = sadd.s32 %s65, 1
      %v1045 = vstv %s1044
      %vm1046 = vcmp.gt.s32.totalorder %v618, %v1045
      %v1047 = vsel %vm1046, 1, 0
      %1048 = vset.pattern.permute.xlu0 0
      %1049 = vperm.xlu0 %1048, %v1047
      %v1050 = vpop.permute.xlu0 %1049
      %vm1051 = vcmp.eq.s32.totalorder %v1050, 1
      %v1052 = vsel %vm1051, %v1043, %v915
      %v1053 = vsel %vm1051, %v1041, %v916
      %s1054 = smul.u32 2, 4
      %s1055 = smul.addr %s1054, 8
      %s1056 = scalar_lea.vmem [#allocation2], %s1055
      %v1057 = vld [vmem:[%s1056] sm:$0xff]
      %v1058 = vld [vmem:[%s1056 + $0x8] sm:$0xff]
      %v1059 = vld [vmem:[%s1056 + $0x10] sm:$0xff]
      %v1060 = vld [vmem:[%s1056 + $0x18] sm:$0xff]
      %v1061 = vpack.c.bf16 %v1052, %v1052
      %1062 = vmatpush.bf16.msra.mxu0 %v753
      %1063 = vmatpush.bf16.msra.mxu0 %v749
      %1064 = vmatpush.bf16.msra.mxu0 %v745
      %1065 = vmatpush.bf16.msra.mxu0 %v741
      %1066 = vmatpush.bf16.msra.mxu0 %v737
      %1067 = vmatpush.bf16.msra.mxu0 %v733
      %1068 = vmatpush.bf16.msra.mxu0 %v729
      %1069 = vmatpush.bf16.msra.mxu0 %v725
      %1070 = vmatmul.bf16.gmra.mxu0 %v1061
      %v1071 = vpop.f32.mrf.mxu0
      %v1072 = vadd.f32 0.0, %v1071
      %v1073 = vpop.f32.mrf.mxu0
      %1074 = vdwg.mxu0
      %1075 = vmatpush.bf16.msra.mxu0 %v754
      %1076 = vmatpush.bf16.msra.mxu0 %v750
      %1077 = vmatpush.bf16.msra.mxu0 %v746
      %1078 = vmatpush.bf16.msra.mxu0 %v742
      %1079 = vmatpush.bf16.msra.mxu0 %v738
      %1080 = vmatpush.bf16.msra.mxu0 %v734
      %1081 = vmatpush.bf16.msra.mxu0 %v730
      %1082 = vmatpush.bf16.msra.mxu0 %v726
      %1083 = vmatmul.bf16.gmra.mxu0 %v1061
      %v1084 = vpop.f32.mrf.mxu0
      %v1085 = vadd.f32 0.0, %v1084
      %v1086 = vpop.f32.mrf.mxu0
      %1087 = vdwg.mxu0
      %1088 = vmatpush.bf16.msra.mxu0 %v755
      %1089 = vmatpush.bf16.msra.mxu0 %v751
      %1090 = vmatpush.bf16.msra.mxu0 %v747
      %1091 = vmatpush.bf16.msra.mxu0 %v743
      %1092 = vmatpush.bf16.msra.mxu0 %v739
      %1093 = vmatpush.bf16.msra.mxu0 %v735
      %1094 = vmatpush.bf16.msra.mxu0 %v731
      %1095 = vmatpush.bf16.msra.mxu0 %v727
      %1096 = vmatmul.bf16.gmra.mxu0 %v1061
      %v1097 = vpop.f32.mrf.mxu0
      %v1098 = vadd.f32 0.0, %v1097
      %v1099 = vpop.f32.mrf.mxu0
      %1100 = vdwg.mxu0
      %1101 = vmatpush.bf16.msra.mxu0 %v756
      %1102 = vmatpush.bf16.msra.mxu0 %v752
      %1103 = vmatpush.bf16.msra.mxu0 %v748
      %1104 = vmatpush.bf16.msra.mxu0 %v744
      %1105 = vmatpush.bf16.msra.mxu0 %v740
      %1106 = vmatpush.bf16.msra.mxu0 %v736
      %1107 = vmatpush.bf16.msra.mxu0 %v732
      %1108 = vmatpush.bf16.msra.mxu0 %v728
      %1109 = vmatmul.bf16.gmra.mxu0 %v1061
      %v1110 = vpop.f32.mrf.mxu0
      %v1111 = vadd.f32 0.0, %v1110
      %v1112 = vpop.f32.mrf.mxu0
      %1113 = vdwg.mxu0
      %v1114 = vadd.f32 %v1057, %v1072
      %v1115 = vadd.f32 %v1058, %v1085
      %v1116 = vadd.f32 %v1059, %v1098
      %v1117 = vadd.f32 %v1060, %v1111
      %v1118 = vxor.u32 %v1114, 2147483648
      %v1119 = vmul.f32 %v1118, 1.442695
      %v1120 = vpow.pop %v1119
      %v1121 = vadd.f32 %v1120, 1.0
      %v1122 = vrcp.pop %v1121
      %v1123 = vmul.f32 %v1121, %v1122
      %v1124 = vsub.f32 1.0, %v1123
      %v1125 = vmul.f32 %v1122, %v1124
      %v1126 = vadd.f32 %v1122, %v1125
      %vm1127 = vweird.f32 %v1121
      %vm1128 = vweird.f32 %v1122
      %vm1129 = vmor %vm1127, %vm1128
      %v1130 = vsel %vm1129, %v1122, %v1126
      %v1131 = vand.u32 2147483647, %v1121
      %vm1132 = vcmp.eq.f32.partialorder %v1131, 8.507059e+37
      %v1133 = vand.u32 %v1121, 2147483648
      %v1134 = vor.u32 1.1754944e-38, %v1133
      %v1135 = vsel %vm1132, %v1134, %v1130
      %v1136 = vmul.f32 1.0, %v1135
      %v1137 = vxor.u32 %v1115, 2147483648
      %v1138 = vmul.f32 %v1137, 1.442695
      %v1139 = vpow.pop %v1138
      %v1140 = vadd.f32 %v1139, 1.0
      %v1141 = vrcp.pop %v1140
      %v1142 = vmul.f32 %v1140, %v1141
      %v1143 = vsub.f32 1.0, %v1142
      %v1144 = vmul.f32 %v1141, %v1143
      %v1145 = vadd.f32 %v1141, %v1144
      %vm1146 = vweird.f32 %v1140
      %vm1147 = vweird.f32 %v1141
      %vm1148 = vmor %vm1146, %vm1147
      %v1149 = vsel %vm1148, %v1141, %v1145
      %v1150 = vand.u32 2147483647, %v1140
      %vm1151 = vcmp.eq.f32.partialorder %v1150, 8.507059e+37
      %v1152 = vand.u32 %v1140, 2147483648
      %v1153 = vor.u32 1.1754944e-38, %v1152
      %v1154 = vsel %vm1151, %v1153, %v1149
      %v1155 = vmul.f32 1.0, %v1154
      %v1156 = vtanh.pop %v1116
      %v1157 = vxor.u32 %v1117, 2147483648
      %v1158 = vmul.f32 %v1157, 1.442695
      %v1159 = vpow.pop %v1158
      %v1160 = vadd.f32 %v1159, 1.0
      %v1161 = vrcp.pop %v1160
      %v1162 = vmul.f32 %v1160, %v1161
      %v1163 = vsub.f32 1.0, %v1162
      %v1164 = vmul.f32 %v1161, %v1163
      %v1165 = vadd.f32 %v1161, %v1164
      %vm1166 = vweird.f32 %v1160
      %vm1167 = vweird.f32 %v1161
      %vm1168 = vmor %vm1166, %vm1167
      %v1169 = vsel %vm1168, %v1161, %v1165
      %v1170 = vand.u32 2147483647, %v1160
      %vm1171 = vcmp.eq.f32.partialorder %v1170, 8.507059e+37
      %v1172 = vand.u32 %v1160, 2147483648
      %v1173 = vor.u32 1.1754944e-38, %v1172
      %v1174 = vsel %vm1171, %v1173, %v1169
      %v1175 = vmul.f32 1.0, %v1174
      %v1176 = vmul.f32 %v1155, %v1053
      %v1177 = vmul.f32 %v1136, %v1156
      %v1178 = vadd.f32 %v1176, %v1177
      %v1179 = vtanh.pop %v1178
      %v1180 = vmul.f32 %v1175, %v1179
      %s1181 = sadd.s32 %s65, 2
      %v1182 = vstv %s1181
      %vm1183 = vcmp.gt.s32.totalorder %v618, %v1182
      %v1184 = vsel %vm1183, 1, 0
      %1185 = vset.pattern.permute.xlu0 0
      %1186 = vperm.xlu0 %1185, %v1184
      %v1187 = vpop.permute.xlu0 %1186
      %vm1188 = vcmp.eq.s32.totalorder %v1187, 1
      %v1189 = vsel %vm1188, %v1180, %v1052
      %v1190 = vsel %vm1188, %v1178, %v1053
      %s1191 = smul.u32 3, 4
      %s1192 = smul.addr %s1191, 8
      %s1193 = scalar_lea.vmem [#allocation2], %s1192
      %v1194 = vld [vmem:[%s1193] sm:$0xff]
      %v1195 = vld [vmem:[%s1193 + $0x8] sm:$0xff]
      %v1196 = vld [vmem:[%s1193 + $0x10] sm:$0xff]
      %v1197 = vld [vmem:[%s1193 + $0x18] sm:$0xff]
      %v1198 = vpack.c.bf16 %v1189, %v1189
      %1199 = vmatpush.bf16.msra.mxu0 %v753
      %1200 = vmatpush.bf16.msra.mxu0 %v749
      %1201 = vmatpush.bf16.msra.mxu0 %v745
      %1202 = vmatpush.bf16.msra.mxu0 %v741
      %1203 = vmatpush.bf16.msra.mxu0 %v737
      %1204 = vmatpush.bf16.msra.mxu0 %v733
      %1205 = vmatpush.bf16.msra.mxu0 %v729
      %1206 = vmatpush.bf16.msra.mxu0 %v725
      %1207 = vmatmul.bf16.gmra.mxu0 %v1198
      %v1208 = vpop.f32.mrf.mxu0
      %v1209 = vadd.f32 0.0, %v1208
      %v1210 = vpop.f32.mrf.mxu0
      %1211 = vdwg.mxu0
      %1212 = vmatpush.bf16.msra.mxu0 %v754
      %1213 = vmatpush.bf16.msra.mxu0 %v750
      %1214 = vmatpush.bf16.msra.mxu0 %v746
      %1215 = vmatpush.bf16.msra.mxu0 %v742
      %1216 = vmatpush.bf16.msra.mxu0 %v738
      %1217 = vmatpush.bf16.msra.mxu0 %v734
      %1218 = vmatpush.bf16.msra.mxu0 %v730
      %1219 = vmatpush.bf16.msra.mxu0 %v726
      %1220 = vmatmul.bf16.gmra.mxu0 %v1198
      %v1221 = vpop.f32.mrf.mxu0
      %v1222 = vadd.f32 0.0, %v1221
      %v1223 = vpop.f32.mrf.mxu0
      %1224 = vdwg.mxu0
      %1225 = vmatpush.bf16.msra.mxu0 %v755
      %1226 = vmatpush.bf16.msra.mxu0 %v751
      %1227 = vmatpush.bf16.msra.mxu0 %v747
      %1228 = vmatpush.bf16.msra.mxu0 %v743
      %1229 = vmatpush.bf16.msra.mxu0 %v739
      %1230 = vmatpush.bf16.msra.mxu0 %v735
      %1231 = vmatpush.bf16.msra.mxu0 %v731
      %1232 = vmatpush.bf16.msra.mxu0 %v727
      %1233 = vmatmul.bf16.gmra.mxu0 %v1198
      %v1234 = vpop.f32.mrf.mxu0
      %v1235 = vadd.f32 0.0, %v1234
      %v1236 = vpop.f32.mrf.mxu0
      %1237 = vdwg.mxu0
      %1238 = vmatpush.bf16.msra.mxu0 %v756
      %1239 = vmatpush.bf16.msra.mxu0 %v752
      %1240 = vmatpush.bf16.msra.mxu0 %v748
      %1241 = vmatpush.bf16.msra.mxu0 %v744
      %1242 = vmatpush.bf16.msra.mxu0 %v740
      %1243 = vmatpush.bf16.msra.mxu0 %v736
      %1244 = vmatpush.bf16.msra.mxu0 %v732
      %1245 = vmatpush.bf16.msra.mxu0 %v728
      %1246 = vmatmul.bf16.gmra.mxu0 %v1198
      %v1247 = vpop.f32.mrf.mxu0
      %v1248 = vadd.f32 0.0, %v1247
      %v1249 = vpop.f32.mrf.mxu0
      %1250 = vdwg.mxu0
      %v1251 = vadd.f32 %v1194, %v1209
      %v1252 = vadd.f32 %v1195, %v1222
      %v1253 = vadd.f32 %v1196, %v1235
      %v1254 = vadd.f32 %v1197, %v1248
      %v1255 = vxor.u32 %v1251, 2147483648
      %v1256 = vmul.f32 %v1255, 1.442695
      %v1257 = vpow.pop %v1256
      %v1258 = vadd.f32 %v1257, 1.0
      %v1259 = vrcp.pop %v1258
      %v1260 = vmul.f32 %v1258, %v1259
      %v1261 = vsub.f32 1.0, %v1260
      %v1262 = vmul.f32 %v1259, %v1261
      %v1263 = vadd.f32 %v1259, %v1262
      %vm1264 = vweird.f32 %v1258
      %vm1265 = vweird.f32 %v1259
      %vm1266 = vmor %vm1264, %vm1265
      %v1267 = vsel %vm1266, %v1259, %v1263
      %v1268 = vand.u32 2147483647, %v1258
      %vm1269 = vcmp.eq.f32.partialorder %v1268, 8.507059e+37
      %v1270 = vand.u32 %v1258, 2147483648
      %v1271 = vor.u32 1.1754944e-38, %v1270
      %v1272 = vsel %vm1269, %v1271, %v1267
      %v1273 = vmul.f32 1.0, %v1272
      %v1274 = vxor.u32 %v1252, 2147483648
      %v1275 = vmul.f32 %v1274, 1.442695
      %v1276 = vpow.pop %v1275
      %v1277 = vadd.f32 %v1276, 1.0
      %v1278 = vrcp.pop %v1277
      %v1279 = vmul.f32 %v1277, %v1278
      %v1280 = vsub.f32 1.0, %v1279
      %v1281 = vmul.f32 %v1278, %v1280
      %v1282 = vadd.f32 %v1278, %v1281
      %vm1283 = vweird.f32 %v1277
      %vm1284 = vweird.f32 %v1278
      %vm1285 = vmor %vm1283, %vm1284
      %v1286 = vsel %vm1285, %v1278, %v1282
      %v1287 = vand.u32 2147483647, %v1277
      %vm1288 = vcmp.eq.f32.partialorder %v1287, 8.507059e+37
      %v1289 = vand.u32 %v1277, 2147483648
      %v1290 = vor.u32 1.1754944e-38, %v1289
      %v1291 = vsel %vm1288, %v1290, %v1286
      %v1292 = vmul.f32 1.0, %v1291
      %v1293 = vtanh.pop %v1253
      %v1294 = vxor.u32 %v1254, 2147483648
      %v1295 = vmul.f32 %v1294, 1.442695
      %v1296 = vpow.pop %v1295
      %v1297 = vadd.f32 %v1296, 1.0
      %v1298 = vrcp.pop %v1297
      %v1299 = vmul.f32 %v1297, %v1298
      %v1300 = vsub.f32 1.0, %v1299
      %v1301 = vmul.f32 %v1298, %v1300
      %v1302 = vadd.f32 %v1298, %v1301
      %vm1303 = vweird.f32 %v1297
      %vm1304 = vweird.f32 %v1298
      %vm1305 = vmor %vm1303, %vm1304
      %v1306 = vsel %vm1305, %v1298, %v1302
      %v1307 = vand.u32 2147483647, %v1297
      %vm1308 = vcmp.eq.f32.partialorder %v1307, 8.507059e+37
      %v1309 = vand.u32 %v1297, 2147483648
      %v1310 = vor.u32 1.1754944e-38, %v1309
      %v1311 = vsel %vm1308, %v1310, %v1306
      %v1312 = vmul.f32 1.0, %v1311
      %v1313 = vmul.f32 %v1292, %v1190
      %v1314 = vmul.f32 %v1273, %v1293
      %v1315 = vadd.f32 %v1313, %v1314
      %v1316 = vtanh.pop %v1315
      %v1317 = vmul.f32 %v1312, %v1316
      %s1318 = sadd.s32 %s65, 3
      %v1319 = vstv %s1318
      %vm1320 = vcmp.gt.s32.totalorder %v618, %v1319
      %v1321 = vsel %vm1320, 1, 0
      %1322 = vset.pattern.permute.xlu0 0
      %1323 = vperm.xlu0 %1322, %v1321
      %v1324 = vpop.permute.xlu0 %1323
      %vm1325 = vcmp.eq.s32.totalorder %v1324, 1
      %v1326 = vsel %vm1325, %v1317, %v1189
      %v1327 = vsel %vm1325, %v1315, %v1190
      %s1328 = smul.u32 4, 4
      %s1329 = smul.addr %s1328, 8
      %s1330 = scalar_lea.vmem [#allocation2], %s1329
      %v1331 = vld [vmem:[%s1330] sm:$0xff]
      %v1332 = vld [vmem:[%s1330 + $0x8] sm:$0xff]
      %v1333 = vld [vmem:[%s1330 + $0x10] sm:$0xff]
      %v1334 = vld [vmem:[%s1330 + $0x18] sm:$0xff]
      %v1335 = vpack.c.bf16 %v1326, %v1326
      %1336 = vmatpush.bf16.msra.mxu0 %v753
      %1337 = vmatpush.bf16.msra.mxu0 %v749
      %1338 = vmatpush.bf16.msra.mxu0 %v745
      %1339 = vmatpush.bf16.msra.mxu0 %v741
      %1340 = vmatpush.bf16.msra.mxu0 %v737
      %1341 = vmatpush.bf16.msra.mxu0 %v733
      %1342 = vmatpush.bf16.msra.mxu0 %v729
      %1343 = vmatpush.bf16.msra.mxu0 %v725
      %1344 = vmatmul.bf16.gmra.mxu0 %v1335
      %v1345 = vpop.f32.mrf.mxu0
      %v1346 = vadd.f32 0.0, %v1345
      %v1347 = vpop.f32.mrf.mxu0
      %1348 = vdwg.mxu0
      %1349 = vmatpush.bf16.msra.mxu0 %v754
      %1350 = vmatpush.bf16.msra.mxu0 %v750
      %1351 = vmatpush.bf16.msra.mxu0 %v746
      %1352 = vmatpush.bf16.msra.mxu0 %v742
      %1353 = vmatpush.bf16.msra.mxu0 %v738
      %1354 = vmatpush.bf16.msra.mxu0 %v734
      %1355 = vmatpush.bf16.msra.mxu0 %v730
      %1356 = vmatpush.bf16.msra.mxu0 %v726
      %1357 = vmatmul.bf16.gmra.mxu0 %v1335
      %v1358 = vpop.f32.mrf.mxu0
      %v1359 = vadd.f32 0.0, %v1358
      %v1360 = vpop.f32.mrf.mxu0
      %1361 = vdwg.mxu0
      %1362 = vmatpush.bf16.msra.mxu0 %v755
      %1363 = vmatpush.bf16.msra.mxu0 %v751
      %1364 = vmatpush.bf16.msra.mxu0 %v747
      %1365 = vmatpush.bf16.msra.mxu0 %v743
      %1366 = vmatpush.bf16.msra.mxu0 %v739
      %1367 = vmatpush.bf16.msra.mxu0 %v735
      %1368 = vmatpush.bf16.msra.mxu0 %v731
      %1369 = vmatpush.bf16.msra.mxu0 %v727
      %1370 = vmatmul.bf16.gmra.mxu0 %v1335
      %v1371 = vpop.f32.mrf.mxu0
      %v1372 = vadd.f32 0.0, %v1371
      %v1373 = vpop.f32.mrf.mxu0
      %1374 = vdwg.mxu0
      %1375 = vmatpush.bf16.msra.mxu0 %v756
      %1376 = vmatpush.bf16.msra.mxu0 %v752
      %1377 = vmatpush.bf16.msra.mxu0 %v748
      %1378 = vmatpush.bf16.msra.mxu0 %v744
      %1379 = vmatpush.bf16.msra.mxu0 %v740
      %1380 = vmatpush.bf16.msra.mxu0 %v736
      %1381 = vmatpush.bf16.msra.mxu0 %v732
      %1382 = vmatpush.bf16.msra.mxu0 %v728
      %1383 = vmatmul.bf16.gmra.mxu0 %v1335
      %v1384 = vpop.f32.mrf.mxu0
      %v1385 = vadd.f32 0.0, %v1384
      %v1386 = vpop.f32.mrf.mxu0
      %1387 = vdwg.mxu0
      %v1388 = vadd.f32 %v1331, %v1346
      %v1389 = vadd.f32 %v1332, %v1359
      %v1390 = vadd.f32 %v1333, %v1372
      %v1391 = vadd.f32 %v1334, %v1385
      %v1392 = vxor.u32 %v1388, 2147483648
      %v1393 = vmul.f32 %v1392, 1.442695
      %v1394 = vpow.pop %v1393
      %v1395 = vadd.f32 %v1394, 1.0
      %v1396 = vrcp.pop %v1395
      %v1397 = vmul.f32 %v1395, %v1396
      %v1398 = vsub.f32 1.0, %v1397
      %v1399 = vmul.f32 %v1396, %v1398
      %v1400 = vadd.f32 %v1396, %v1399
      %vm1401 = vweird.f32 %v1395
      %vm1402 = vweird.f32 %v1396
      %vm1403 = vmor %vm1401, %vm1402
      %v1404 = vsel %vm1403, %v1396, %v1400
      %v1405 = vand.u32 2147483647, %v1395
      %vm1406 = vcmp.eq.f32.partialorder %v1405, 8.507059e+37
      %v1407 = vand.u32 %v1395, 2147483648
      %v1408 = vor.u32 1.1754944e-38, %v1407
      %v1409 = vsel %vm1406, %v1408, %v1404
      %v1410 = vmul.f32 1.0, %v1409
      %v1411 = vxor.u32 %v1389, 2147483648
      %v1412 = vmul.f32 %v1411, 1.442695
      %v1413 = vpow.pop %v1412
      %v1414 = vadd.f32 %v1413, 1.0
      %v1415 = vrcp.pop %v1414
      %v1416 = vmul.f32 %v1414, %v1415
      %v1417 = vsub.f32 1.0, %v1416
      %v1418 = vmul.f32 %v1415, %v1417
      %v1419 = vadd.f32 %v1415, %v1418
      %vm1420 = vweird.f32 %v1414
      %vm1421 = vweird.f32 %v1415
      %vm1422 = vmor %vm1420, %vm1421
      %v1423 = vsel %vm1422, %v1415, %v1419
      %v1424 = vand.u32 2147483647, %v1414
      %vm1425 = vcmp.eq.f32.partialorder %v1424, 8.507059e+37
      %v1426 = vand.u32 %v1414, 2147483648
      %v1427 = vor.u32 1.1754944e-38, %v1426
      %v1428 = vsel %vm1425, %v1427, %v1423
      %v1429 = vmul.f32 1.0, %v1428
      %v1430 = vtanh.pop %v1390
      %v1431 = vxor.u32 %v1391, 2147483648
      %v1432 = vmul.f32 %v1431, 1.442695
      %v1433 = vpow.pop %v1432
      %v1434 = vadd.f32 %v1433, 1.0
      %v1435 = vrcp.pop %v1434
      %v1436 = vmul.f32 %v1434, %v1435
      %v1437 = vsub.f32 1.0, %v1436
      %v1438 = vmul.f32 %v1435, %v1437
      %v1439 = vadd.f32 %v1435, %v1438
      %vm1440 = vweird.f32 %v1434
      %vm1441 = vweird.f32 %v1435
      %vm1442 = vmor %vm1440, %vm1441
      %v1443 = vsel %vm1442, %v1435, %v1439
      %v1444 = vand.u32 2147483647, %v1434
      %vm1445 = vcmp.eq.f32.partialorder %v1444, 8.507059e+37
      %v1446 = vand.u32 %v1434, 2147483648
      %v1447 = vor.u32 1.1754944e-38, %v1446
      %v1448 = vsel %vm1445, %v1447, %v1443
      %v1449 = vmul.f32 1.0, %v1448
      %v1450 = vmul.f32 %v1429, %v1327
      %v1451 = vmul.f32 %v1410, %v1430
      %v1452 = vadd.f32 %v1450, %v1451
      %v1453 = vtanh.pop %v1452
      %v1454 = vmul.f32 %v1449, %v1453
      %s1455 = sadd.s32 %s65, 4
      %v1456 = vstv %s1455
      %vm1457 = vcmp.gt.s32.totalorder %v618, %v1456
      %v1458 = vsel %vm1457, 1, 0
      %1459 = vset.pattern.permute.xlu0 0
      %1460 = vperm.xlu0 %1459, %v1458
      %v1461 = vpop.permute.xlu0 %1460
      %vm1462 = vcmp.eq.s32.totalorder %v1461, 1
      %v1463 = vsel %vm1462, %v1454, %v1326
      %v1464 = vsel %vm1462, %v1452, %v1327
      %s1465 = smul.u32 5, 4
      %s1466 = smul.addr %s1465, 8
      %s1467 = scalar_lea.vmem [#allocation2], %s1466
      %v1468 = vld [vmem:[%s1467] sm:$0xff]
      %v1469 = vld [vmem:[%s1467 + $0x8] sm:$0xff]
      %v1470 = vld [vmem:[%s1467 + $0x10] sm:$0xff]
      %v1471 = vld [vmem:[%s1467 + $0x18] sm:$0xff]
      %v1472 = vpack.c.bf16 %v1463, %v1463
      %1473 = vmatpush.bf16.msra.mxu0 %v753
      %1474 = vmatpush.bf16.msra.mxu0 %v749
      %1475 = vmatpush.bf16.msra.mxu0 %v745
      %1476 = vmatpush.bf16.msra.mxu0 %v741
      %1477 = vmatpush.bf16.msra.mxu0 %v737
      %1478 = vmatpush.bf16.msra.mxu0 %v733
      %1479 = vmatpush.bf16.msra.mxu0 %v729
      %1480 = vmatpush.bf16.msra.mxu0 %v725
      %1481 = vmatmul.bf16.gmra.mxu0 %v1472
      %v1482 = vpop.f32.mrf.mxu0
      %v1483 = vadd.f32 0.0, %v1482
      %v1484 = vpop.f32.mrf.mxu0
      %1485 = vdwg.mxu0
      %1486 = vmatpush.bf16.msra.mxu0 %v754
      %1487 = vmatpush.bf16.msra.mxu0 %v750
      %1488 = vmatpush.bf16.msra.mxu0 %v746
      %1489 = vmatpush.bf16.msra.mxu0 %v742
      %1490 = vmatpush.bf16.msra.mxu0 %v738
      %1491 = vmatpush.bf16.msra.mxu0 %v734
      %1492 = vmatpush.bf16.msra.mxu0 %v730
      %1493 = vmatpush.bf16.msra.mxu0 %v726
      %1494 = vmatmul.bf16.gmra.mxu0 %v1472
      %v1495 = vpop.f32.mrf.mxu0
      %v1496 = vadd.f32 0.0, %v1495
      %v1497 = vpop.f32.mrf.mxu0
      %1498 = vdwg.mxu0
      %1499 = vmatpush.bf16.msra.mxu0 %v755
      %1500 = vmatpush.bf16.msra.mxu0 %v751
      %1501 = vmatpush.bf16.msra.mxu0 %v747
      %1502 = vmatpush.bf16.msra.mxu0 %v743
      %1503 = vmatpush.bf16.msra.mxu0 %v739
      %1504 = vmatpush.bf16.msra.mxu0 %v735
      %1505 = vmatpush.bf16.msra.mxu0 %v731
      %1506 = vmatpush.bf16.msra.mxu0 %v727
      %1507 = vmatmul.bf16.gmra.mxu0 %v1472
      %v1508 = vpop.f32.mrf.mxu0
      %v1509 = vadd.f32 0.0, %v1508
      %v1510 = vpop.f32.mrf.mxu0
      %1511 = vdwg.mxu0
      %1512 = vmatpush.bf16.msra.mxu0 %v756
      %1513 = vmatpush.bf16.msra.mxu0 %v752
      %1514 = vmatpush.bf16.msra.mxu0 %v748
      %1515 = vmatpush.bf16.msra.mxu0 %v744
      %1516 = vmatpush.bf16.msra.mxu0 %v740
      %1517 = vmatpush.bf16.msra.mxu0 %v736
      %1518 = vmatpush.bf16.msra.mxu0 %v732
      %1519 = vmatpush.bf16.msra.mxu0 %v728
      %1520 = vmatmul.bf16.gmra.mxu0 %v1472
      %v1521 = vpop.f32.mrf.mxu0
      %v1522 = vadd.f32 0.0, %v1521
      %v1523 = vpop.f32.mrf.mxu0
      %1524 = vdwg.mxu0
      %v1525 = vadd.f32 %v1468, %v1483
      %v1526 = vadd.f32 %v1469, %v1496
      %v1527 = vadd.f32 %v1470, %v1509
      %v1528 = vadd.f32 %v1471, %v1522
      %v1529 = vxor.u32 %v1525, 2147483648
      %v1530 = vmul.f32 %v1529, 1.442695
      %v1531 = vpow.pop %v1530
      %v1532 = vadd.f32 %v1531, 1.0
      %v1533 = vrcp.pop %v1532
      %v1534 = vmul.f32 %v1532, %v1533
      %v1535 = vsub.f32 1.0, %v1534
      %v1536 = vmul.f32 %v1533, %v1535
      %v1537 = vadd.f32 %v1533, %v1536
      %vm1538 = vweird.f32 %v1532
      %vm1539 = vweird.f32 %v1533
      %vm1540 = vmor %vm1538, %vm1539
      %v1541 = vsel %vm1540, %v1533, %v1537
      %v1542 = vand.u32 2147483647, %v1532
      %vm1543 = vcmp.eq.f32.partialorder %v1542, 8.507059e+37
      %v1544 = vand.u32 %v1532, 2147483648
      %v1545 = vor.u32 1.1754944e-38, %v1544
      %v1546 = vsel %vm1543, %v1545, %v1541
      %v1547 = vmul.f32 1.0, %v1546
      %v1548 = vxor.u32 %v1526, 2147483648
      %v1549 = vmul.f32 %v1548, 1.442695
      %v1550 = vpow.pop %v1549
      %v1551 = vadd.f32 %v1550, 1.0
      %v1552 = vrcp.pop %v1551
      %v1553 = vmul.f32 %v1551, %v1552
      %v1554 = vsub.f32 1.0, %v1553
      %v1555 = vmul.f32 %v1552, %v1554
      %v1556 = vadd.f32 %v1552, %v1555
      %vm1557 = vweird.f32 %v1551
      %vm1558 = vweird.f32 %v1552
      %vm1559 = vmor %vm1557, %vm1558
      %v1560 = vsel %vm1559, %v1552, %v1556
      %v1561 = vand.u32 2147483647, %v1551
      %vm1562 = vcmp.eq.f32.partialorder %v1561, 8.507059e+37
      %v1563 = vand.u32 %v1551, 2147483648
      %v1564 = vor.u32 1.1754944e-38, %v1563
      %v1565 = vsel %vm1562, %v1564, %v1560
      %v1566 = vmul.f32 1.0, %v1565
      %v1567 = vtanh.pop %v1527
      %v1568 = vxor.u32 %v1528, 2147483648
      %v1569 = vmul.f32 %v1568, 1.442695
      %v1570 = vpow.pop %v1569
      %v1571 = vadd.f32 %v1570, 1.0
      %v1572 = vrcp.pop %v1571
      %v1573 = vmul.f32 %v1571, %v1572
      %v1574 = vsub.f32 1.0, %v1573
      %v1575 = vmul.f32 %v1572, %v1574
      %v1576 = vadd.f32 %v1572, %v1575
      %vm1577 = vweird.f32 %v1571
      %vm1578 = vweird.f32 %v1572
      %vm1579 = vmor %vm1577, %vm1578
      %v1580 = vsel %vm1579, %v1572, %v1576
      %v1581 = vand.u32 2147483647, %v1571
      %vm1582 = vcmp.eq.f32.partialorder %v1581, 8.507059e+37
      %v1583 = vand.u32 %v1571, 2147483648
      %v1584 = vor.u32 1.1754944e-38, %v1583
      %v1585 = vsel %vm1582, %v1584, %v1580
      %v1586 = vmul.f32 1.0, %v1585
      %v1587 = vmul.f32 %v1566, %v1464
      %v1588 = vmul.f32 %v1547, %v1567
      %v1589 = vadd.f32 %v1587, %v1588
      %v1590 = vtanh.pop %v1589
      %v1591 = vmul.f32 %v1586, %v1590
      %s1592 = sadd.s32 %s65, 5
      %v1593 = vstv %s1592
      %vm1594 = vcmp.gt.s32.totalorder %v618, %v1593
      %v1595 = vsel %vm1594, 1, 0
      %1596 = vset.pattern.permute.xlu0 0
      %1597 = vperm.xlu0 %1596, %v1595
      %v1598 = vpop.permute.xlu0 %1597
      %vm1599 = vcmp.eq.s32.totalorder %v1598, 1
      %v1600 = vsel %vm1599, %v1591, %v1463
      %v1601 = vsel %vm1599, %v1589, %v1464
      %s1602 = smul.u32 6, 4
      %s1603 = smul.addr %s1602, 8
      %s1604 = scalar_lea.vmem [#allocation2], %s1603
      %v1605 = vld [vmem:[%s1604] sm:$0xff]
      %v1606 = vld [vmem:[%s1604 + $0x8] sm:$0xff]
      %v1607 = vld [vmem:[%s1604 + $0x10] sm:$0xff]
      %v1608 = vld [vmem:[%s1604 + $0x18] sm:$0xff]
      %v1609 = vpack.c.bf16 %v1600, %v1600
      %1610 = vmatpush.bf16.msra.mxu0 %v753
      %1611 = vmatpush.bf16.msra.mxu0 %v749
      %1612 = vmatpush.bf16.msra.mxu0 %v745
      %1613 = vmatpush.bf16.msra.mxu0 %v741
      %1614 = vmatpush.bf16.msra.mxu0 %v737
      %1615 = vmatpush.bf16.msra.mxu0 %v733
      %1616 = vmatpush.bf16.msra.mxu0 %v729
      %1617 = vmatpush.bf16.msra.mxu0 %v725
      %1618 = vmatmul.bf16.gmra.mxu0 %v1609
      %v1619 = vpop.f32.mrf.mxu0
      %v1620 = vadd.f32 0.0, %v1619
      %v1621 = vpop.f32.mrf.mxu0
      %1622 = vdwg.mxu0
      %1623 = vmatpush.bf16.msra.mxu0 %v754
      %1624 = vmatpush.bf16.msra.mxu0 %v750
      %1625 = vmatpush.bf16.msra.mxu0 %v746
      %1626 = vmatpush.bf16.msra.mxu0 %v742
      %1627 = vmatpush.bf16.msra.mxu0 %v738
      %1628 = vmatpush.bf16.msra.mxu0 %v734
      %1629 = vmatpush.bf16.msra.mxu0 %v730
      %1630 = vmatpush.bf16.msra.mxu0 %v726
      %1631 = vmatmul.bf16.gmra.mxu0 %v1609
      %v1632 = vpop.f32.mrf.mxu0
      %v1633 = vadd.f32 0.0, %v1632
      %v1634 = vpop.f32.mrf.mxu0
      %1635 = vdwg.mxu0
      %1636 = vmatpush.bf16.msra.mxu0 %v755
      %1637 = vmatpush.bf16.msra.mxu0 %v751
      %1638 = vmatpush.bf16.msra.mxu0 %v747
      %1639 = vmatpush.bf16.msra.mxu0 %v743
      %1640 = vmatpush.bf16.msra.mxu0 %v739
      %1641 = vmatpush.bf16.msra.mxu0 %v735
      %1642 = vmatpush.bf16.msra.mxu0 %v731
      %1643 = vmatpush.bf16.msra.mxu0 %v727
      %1644 = vmatmul.bf16.gmra.mxu0 %v1609
      %v1645 = vpop.f32.mrf.mxu0
      %v1646 = vadd.f32 0.0, %v1645
      %v1647 = vpop.f32.mrf.mxu0
      %1648 = vdwg.mxu0
      %1649 = vmatpush.bf16.msra.mxu0 %v756
      %1650 = vmatpush.bf16.msra.mxu0 %v752
      %1651 = vmatpush.bf16.msra.mxu0 %v748
      %1652 = vmatpush.bf16.msra.mxu0 %v744
      %1653 = vmatpush.bf16.msra.mxu0 %v740
      %1654 = vmatpush.bf16.msra.mxu0 %v736
      %1655 = vmatpush.bf16.msra.mxu0 %v732
      %1656 = vmatpush.bf16.msra.mxu0 %v728
      %1657 = vmatmul.bf16.gmra.mxu0 %v1609
      %v1658 = vpop.f32.mrf.mxu0
      %v1659 = vadd.f32 0.0, %v1658
      %v1660 = vpop.f32.mrf.mxu0
      %1661 = vdwg.mxu0
      %v1662 = vadd.f32 %v1605, %v1620
      %v1663 = vadd.f32 %v1606, %v1633
      %v1664 = vadd.f32 %v1607, %v1646
      %v1665 = vadd.f32 %v1608, %v1659
      %v1666 = vxor.u32 %v1662, 2147483648
      %v1667 = vmul.f32 %v1666, 1.442695
      %v1668 = vpow.pop %v1667
      %v1669 = vadd.f32 %v1668, 1.0
      %v1670 = vrcp.pop %v1669
      %v1671 = vmul.f32 %v1669, %v1670
      %v1672 = vsub.f32 1.0, %v1671
      %v1673 = vmul.f32 %v1670, %v1672
      %v1674 = vadd.f32 %v1670, %v1673
      %vm1675 = vweird.f32 %v1669
      %vm1676 = vweird.f32 %v1670
      %vm1677 = vmor %vm1675, %vm1676
      %v1678 = vsel %vm1677, %v1670, %v1674
      %v1679 = vand.u32 2147483647, %v1669
      %vm1680 = vcmp.eq.f32.partialorder %v1679, 8.507059e+37
      %v1681 = vand.u32 %v1669, 2147483648
      %v1682 = vor.u32 1.1754944e-38, %v1681
      %v1683 = vsel %vm1680, %v1682, %v1678
      %v1684 = vmul.f32 1.0, %v1683
      %v1685 = vxor.u32 %v1663, 2147483648
      %v1686 = vmul.f32 %v1685, 1.442695
      %v1687 = vpow.pop %v1686
      %v1688 = vadd.f32 %v1687, 1.0
      %v1689 = vrcp.pop %v1688
      %v1690 = vmul.f32 %v1688, %v1689
      %v1691 = vsub.f32 1.0, %v1690
      %v1692 = vmul.f32 %v1689, %v1691
      %v1693 = vadd.f32 %v1689, %v1692
      %vm1694 = vweird.f32 %v1688
      %vm1695 = vweird.f32 %v1689
      %vm1696 = vmor %vm1694, %vm1695
      %v1697 = vsel %vm1696, %v1689, %v1693
      %v1698 = vand.u32 2147483647, %v1688
      %vm1699 = vcmp.eq.f32.partialorder %v1698, 8.507059e+37
      %v1700 = vand.u32 %v1688, 2147483648
      %v1701 = vor.u32 1.1754944e-38, %v1700
      %v1702 = vsel %vm1699, %v1701, %v1697
      %v1703 = vmul.f32 1.0, %v1702
      %v1704 = vtanh.pop %v1664
      %v1705 = vxor.u32 %v1665, 2147483648
      %v1706 = vmul.f32 %v1705, 1.442695
      %v1707 = vpow.pop %v1706
      %v1708 = vadd.f32 %v1707, 1.0
      %v1709 = vrcp.pop %v1708
      %v1710 = vmul.f32 %v1708, %v1709
      %v1711 = vsub.f32 1.0, %v1710
      %v1712 = vmul.f32 %v1709, %v1711
      %v1713 = vadd.f32 %v1709, %v1712
      %vm1714 = vweird.f32 %v1708
      %vm1715 = vweird.f32 %v1709
      %vm1716 = vmor %vm1714, %vm1715
      %v1717 = vsel %vm1716, %v1709, %v1713
      %v1718 = vand.u32 2147483647, %v1708
      %vm1719 = vcmp.eq.f32.partialorder %v1718, 8.507059e+37
      %v1720 = vand.u32 %v1708, 2147483648
      %v1721 = vor.u32 1.1754944e-38, %v1720
      %v1722 = vsel %vm1719, %v1721, %v1717
      %v1723 = vmul.f32 1.0, %v1722
      %v1724 = vmul.f32 %v1703, %v1601
      %v1725 = vmul.f32 %v1684, %v1704
      %v1726 = vadd.f32 %v1724, %v1725
      %v1727 = vtanh.pop %v1726
      %v1728 = vmul.f32 %v1723, %v1727
      %s1729 = sadd.s32 %s65, 6
      %v1730 = vstv %s1729
      %vm1731 = vcmp.gt.s32.totalorder %v618, %v1730
      %v1732 = vsel %vm1731, 1, 0
      %1733 = vset.pattern.permute.xlu0 0
      %1734 = vperm.xlu0 %1733, %v1732
      %v1735 = vpop.permute.xlu0 %1734
      %vm1736 = vcmp.eq.s32.totalorder %v1735, 1
      %v1737 = vsel %vm1736, %v1728, %v1600
      %v1738 = vsel %vm1736, %v1726, %v1601
      %s1739 = smul.u32 7, 4
      %s1740 = smul.addr %s1739, 8
      %s1741 = scalar_lea.vmem [#allocation2], %s1740
      %v1742 = vld [vmem:[%s1741] sm:$0xff]
      %v1743 = vld [vmem:[%s1741 + $0x8] sm:$0xff]
      %v1744 = vld [vmem:[%s1741 + $0x10] sm:$0xff]
      %v1745 = vld [vmem:[%s1741 + $0x18] sm:$0xff]
      %v1746 = vpack.c.bf16 %v1737, %v1737
      %1747 = vmatpush.bf16.msra.mxu0 %v753
      %1748 = vmatpush.bf16.msra.mxu0 %v749
      %1749 = vmatpush.bf16.msra.mxu0 %v745
      %1750 = vmatpush.bf16.msra.mxu0 %v741
      %1751 = vmatpush.bf16.msra.mxu0 %v737
      %1752 = vmatpush.bf16.msra.mxu0 %v733
      %1753 = vmatpush.bf16.msra.mxu0 %v729
      %1754 = vmatpush.bf16.msra.mxu0 %v725
      %1755 = vmatmul.bf16.gmra.mxu0 %v1746
      %v1756 = vpop.f32.mrf.mxu0
      %v1757 = vadd.f32 0.0, %v1756
      %v1758 = vpop.f32.mrf.mxu0
      %1759 = vdwg.mxu0
      %1760 = vmatpush.bf16.msra.mxu0 %v754
      %1761 = vmatpush.bf16.msra.mxu0 %v750
      %1762 = vmatpush.bf16.msra.mxu0 %v746
      %1763 = vmatpush.bf16.msra.mxu0 %v742
      %1764 = vmatpush.bf16.msra.mxu0 %v738
      %1765 = vmatpush.bf16.msra.mxu0 %v734
      %1766 = vmatpush.bf16.msra.mxu0 %v730
      %1767 = vmatpush.bf16.msra.mxu0 %v726
      %1768 = vmatmul.bf16.gmra.mxu0 %v1746
      %v1769 = vpop.f32.mrf.mxu0
      %v1770 = vadd.f32 0.0, %v1769
      %v1771 = vpop.f32.mrf.mxu0
      %1772 = vdwg.mxu0
      %1773 = vmatpush.bf16.msra.mxu0 %v755
      %1774 = vmatpush.bf16.msra.mxu0 %v751
      %1775 = vmatpush.bf16.msra.mxu0 %v747
      %1776 = vmatpush.bf16.msra.mxu0 %v743
      %1777 = vmatpush.bf16.msra.mxu0 %v739
      %1778 = vmatpush.bf16.msra.mxu0 %v735
      %1779 = vmatpush.bf16.msra.mxu0 %v731
      %1780 = vmatpush.bf16.msra.mxu0 %v727
      %1781 = vmatmul.bf16.gmra.mxu0 %v1746
      %v1782 = vpop.f32.mrf.mxu0
      %v1783 = vadd.f32 0.0, %v1782
      %v1784 = vpop.f32.mrf.mxu0
      %1785 = vdwg.mxu0
      %1786 = vmatpush.bf16.msra.mxu0 %v756
      %1787 = vmatpush.bf16.msra.mxu0 %v752
      %1788 = vmatpush.bf16.msra.mxu0 %v748
      %1789 = vmatpush.bf16.msra.mxu0 %v744
      %1790 = vmatpush.bf16.msra.mxu0 %v740
      %1791 = vmatpush.bf16.msra.mxu0 %v736
      %1792 = vmatpush.bf16.msra.mxu0 %v732
      %1793 = vmatpush.bf16.msra.mxu0 %v728
      %1794 = vmatmul.bf16.gmra.mxu0 %v1746
      %v1795 = vpop.f32.mrf.mxu0
      %v1796 = vadd.f32 0.0, %v1795
      %v1797 = vpop.f32.mrf.mxu0
      %1798 = vdwg.mxu0
      %v1799 = vadd.f32 %v1742, %v1757
      %v1800 = vadd.f32 %v1743, %v1770
      %v1801 = vadd.f32 %v1744, %v1783
      %v1802 = vadd.f32 %v1745, %v1796
      %v1803 = vxor.u32 %v1799, 2147483648
      %v1804 = vmul.f32 %v1803, 1.442695
      %v1805 = vpow.pop %v1804
      %v1806 = vadd.f32 %v1805, 1.0
      %v1807 = vrcp.pop %v1806
      %v1808 = vmul.f32 %v1806, %v1807
      %v1809 = vsub.f32 1.0, %v1808
      %v1810 = vmul.f32 %v1807, %v1809
      %v1811 = vadd.f32 %v1807, %v1810
      %vm1812 = vweird.f32 %v1806
      %vm1813 = vweird.f32 %v1807
      %vm1814 = vmor %vm1812, %vm1813
      %v1815 = vsel %vm1814, %v1807, %v1811
      %v1816 = vand.u32 2147483647, %v1806
      %vm1817 = vcmp.eq.f32.partialorder %v1816, 8.507059e+37
      %v1818 = vand.u32 %v1806, 2147483648
      %v1819 = vor.u32 1.1754944e-38, %v1818
      %v1820 = vsel %vm1817, %v1819, %v1815
      %v1821 = vmul.f32 1.0, %v1820
      %v1822 = vxor.u32 %v1800, 2147483648
      %v1823 = vmul.f32 %v1822, 1.442695
      %v1824 = vpow.pop %v1823
      %v1825 = vadd.f32 %v1824, 1.0
      %v1826 = vrcp.pop %v1825
      %v1827 = vmul.f32 %v1825, %v1826
      %v1828 = vsub.f32 1.0, %v1827
      %v1829 = vmul.f32 %v1826, %v1828
      %v1830 = vadd.f32 %v1826, %v1829
      %vm1831 = vweird.f32 %v1825
      %vm1832 = vweird.f32 %v1826
      %vm1833 = vmor %vm1831, %vm1832
      %v1834 = vsel %vm1833, %v1826, %v1830
      %v1835 = vand.u32 2147483647, %v1825
      %vm1836 = vcmp.eq.f32.partialorder %v1835, 8.507059e+37
      %v1837 = vand.u32 %v1825, 2147483648
      %v1838 = vor.u32 1.1754944e-38, %v1837
      %v1839 = vsel %vm1836, %v1838, %v1834
      %v1840 = vmul.f32 1.0, %v1839
      %v1841 = vtanh.pop %v1801
      %v1842 = vxor.u32 %v1802, 2147483648
      %v1843 = vmul.f32 %v1842, 1.442695
      %v1844 = vpow.pop %v1843
      %v1845 = vadd.f32 %v1844, 1.0
      %v1846 = vrcp.pop %v1845
      %v1847 = vmul.f32 %v1845, %v1846
      %v1848 = vsub.f32 1.0, %v1847
      %v1849 = vmul.f32 %v1846, %v1848
      %v1850 = vadd.f32 %v1846, %v1849
      %vm1851 = vweird.f32 %v1845
      %vm1852 = vweird.f32 %v1846
      %vm1853 = vmor %vm1851, %vm1852
      %v1854 = vsel %vm1853, %v1846, %v1850
      %v1855 = vand.u32 2147483647, %v1845
      %vm1856 = vcmp.eq.f32.partialorder %v1855, 8.507059e+37
      %v1857 = vand.u32 %v1845, 2147483648
      %v1858 = vor.u32 1.1754944e-38, %v1857
      %v1859 = vsel %vm1856, %v1858, %v1854
      %v1860 = vmul.f32 1.0, %v1859
      %v1861 = vmul.f32 %v1840, %v1738
      %v1862 = vmul.f32 %v1821, %v1841
      %v1863 = vadd.f32 %v1861, %v1862
      %v1864 = vtanh.pop %v1863
      %v1865 = vmul.f32 %v1860, %v1864
      %s1866 = sadd.s32 %s65, 7
      %v1867 = vstv %s1866
      %vm1868 = vcmp.gt.s32.totalorder %v618, %v1867
      %v1869 = vsel %vm1868, 1, 0
      %1870 = vset.pattern.permute.xlu0 0
      %1871 = vperm.xlu0 %1870, %v1869
      %v1872 = vpop.permute.xlu0 %1871
      %vm1873 = vcmp.eq.s32.totalorder %v1872, 1
      %v1874 = vsel %vm1873, %v1865, %v1737
      %v1875 = vsel %vm1873, %v1863, %v1738
      %1876 = vst [vmem:[#allocation3] sm:$0xff] %v1874
      %1877 = vst [vmem:[#allocation4] sm:$0xff] %v1875
    $region49: #{tpu_custom_call.1} parent=1 // pred_fallthru
      _
    // Predicated region
    $region50: #{tpu_custom_call.1} parent=1 // pred_check
      %p1878 = pneg %p67
    $region51: #{tpu_custom_call.1} parent=1 // pred_check_branch
      %1880 = sbr.rel (%p1878) target = $region53
    $region52: #{tpu_custom_call.1} parent=1 // pred_region
      %v1881 = vld [vmem:[%s2] sm:$0xff]
      %v1882 = vstv %s66
      %vm1883 = vcmp.eq.s32.totalorder %v1881, %v1882
      %v1884 = vld [vmem:[#allocation3] sm:$0xff]
      %v1885 = vsel %vm1883, 1, 0
      %1886 = vset.pattern.permute.xlu0 0
      %1887 = vperm.xlu0 %1886, %v1885
      %v1888 = vpop.permute.xlu0 %1887
      %vm1889 = vcmp.eq.s32.totalorder %v1888, 1
      %v1890 = vsel %vm1889, %v1884, 0.0
      %vm1891 = vcmp.ge.f32.partialorder %v1890, 0.0
      %v1892 = vmul.f32 %v1890, 0.2
      %v1893 = vsel %vm1891, %v1890, %v1892
      %v1894 = vld [vmem:[%s7] sm:$0x1]
      %v1896 = vperm.slane %v1894, 0
      %v1898 = vmul.f32 %v1893, %v1896
      %1899 = vadd.xlane.f32.xlu0 %v1898
      %v1900 = vpop.xlane.xlu0 %1899
      %v1901 = vld [vmem:[#allocation7] sm:$0x1]
      %v1903 = vperm.slane %v1901, 0
      %v1905 = vadd.f32 %v1900, %v1903
      %v1906 = vxor.u32 %v1905, 2147483648
      %v1907 = vmul.f32 %v1906, 1.442695
      %v1908 = vpow.pop %v1907
      %v1909 = vadd.f32 %v1908, 1.0
      %v1910 = vrcp.pop %v1909
      %v1911 = vmul.f32 %v1909, %v1910
      %v1912 = vsub.f32 1.0, %v1911
      %v1913 = vmul.f32 %v1910, %v1912
      %v1914 = vadd.f32 %v1910, %v1913
      %vm1915 = vweird.f32 %v1909
      %vm1916 = vweird.f32 %v1910
      %vm1917 = vmor %vm1915, %vm1916
      %v1918 = vsel %vm1917, %v1910, %v1914
      %v1919 = vand.u32 2147483647, %v1909
      %vm1920 = vcmp.eq.f32.partialorder %v1919, 8.507059e+37
      %v1921 = vand.u32 %v1909, 2147483648
      %v1922 = vor.u32 1.1754944e-38, %v1921
      %v1923 = vsel %vm1920, %v1922, %v1918
      %v1924 = vmul.f32 1.0, %v1923
      %vm1925 = vcmask 7168
      %1926 = vst.msk [vmem:[%s9] sm:$0xff] %vm1925, %v1924
    $region53: #{tpu_custom_call.1} parent=1 // pred_fallthru
      _
    // Predicated region
    $region54: #{tpu_custom_call.1} parent=1 // pred_check
      _
    $region55: #{tpu_custom_call.1} parent=1 // pred_check_branch
      %1928 = sbr.rel (0) target = $region57
    $region56: #{tpu_custom_call.1} parent=1 // pred_region
      _
    $region57: #{tpu_custom_call.1} parent=1 // pred_fallthru
      _
    // Predicated region
    $region58: #{tpu_custom_call.1} parent=1 // pred_check
      _
    $region59: #{tpu_custom_call.1} parent=1 // pred_check_branch
      %1930 = sbr.rel (0) target = $region61
    $region60: #{tpu_custom_call.1} parent=1 // pred_region
      _
    $region61: #{tpu_custom_call.1} parent=1 // pred_fallthru
      _
    %1931 = vsyncpa [#allocation9], 1
    %1932 = vsyncpa [#allocation11], 1

</llo_original>
